<compile_context>
chip_gen: v5e
topology: v5e:2x2
jax: 0.10.0
libtpu: 0.0.40
codegen_flags: <defaults>
</compile_context>

<pallas_src>
import numpy as np
import jax
import jax.numpy as jnp
from jax.experimental import pallas as pl
from jax.experimental.pallas import tpu as pltpu

# ----------------------------- configuration -----------------------------
EMBED_DIM   = 32          # embed_dim
FF_DIM      = 64          # feedforward_dim
N_HEADS     = 4
HEAD_DIM    = EMBED_DIM // N_HEADS
N_LEVELS    = 2           # num_feature_levels
N_POINTS    = 2           # enc_num_points
NUM_LAYERS  = 2           # num_encoder_layers
LP          = N_LEVELS * N_POINTS
OFF_DIM     = N_HEADS * LP * 3      # sampling_offsets linear out dim (48)
AW_DIM      = N_HEADS * LP          # attention_weights linear out dim (16)
QA_DIM      = OFF_DIM + AW_DIM      # fused q-path matmul width (64)
SW          = N_HEADS * LP * HEAD_DIM   # expanded sample width (128 = 1 vreg)
SLAB_W      = 128                   # packed lane-dense proj output width
VAL_OFF     = 0
LOC_OFF     = EMBED_DIM                     # 32
ATT_OFF     = EMBED_DIM + OFF_DIM           # 80
PAD_OFF     = EMBED_DIM + OFF_DIM + AW_DIM  # 96
LN_EPS      = 1e-5
MAX_ROW_TILE = 1024

_CPARAMS = pltpu.CompilerParams(
    dimension_semantics=("parallel",),
    vmem_limit_bytes=32 * 1024 * 1024,
)


# ----------------------------- Pallas kernels -----------------------------
def _layer_norm(x, gamma, beta):
    mu = jnp.mean(x, axis=-1, keepdims=True)
    var = jnp.mean((x - mu) ** 2, axis=-1, keepdims=True)
    return (x - mu) * jax.lax.rsqrt(var + LN_EPS) * gamma + beta


def proj_kernel(x_ref, pos_ref, ref_ref, wv_ref, bv_ref, wqa_ref, bqa_ref,
                invn_ref, hsum_ref, slab_ref):
    """value_proj(x); fused [offsets|attn-logits](x+pos); per-head softmax; sampling locs.

    Inputs x/pos are bf16 (halved HBM read traffic); weights bf16; accumulation f32.
    Output: one lane-dense (TM, 128) f32 slab  [ val(32) | loc(48) | attn16(16) | pad(32) ].
    """
    x = x_ref[...]                      # bf16 (TM, C)
    q = x + pos_ref[...]                # bf16

    val = (jnp.dot(x, wv_ref[...], preferred_element_type=jnp.float32) + bv_ref[...])
    z = (jnp.dot(q, wqa_ref[...], preferred_element_type=jnp.float32) + bqa_ref[...])
    off = z[:, :OFF_DIM]                # (TM, 48) f32
    logits = z[:, OFF_DIM:]             # (TM, 16) f32

    # sampling locations: ref + off / (W,H,D) per level (constants baked into invn / ref rows)
    loc = off * invn_ref[...] + ref_ref[...]

    # Per-head softmax.  Row-wide max is the same constant within each head group
    # (mathematically equivalent); denominator is clamped so that a fully-underflowed head
    # cannot produce Inf/NaN through the approximate reciprocal.
    m = jnp.max(logits, axis=-1, keepdims=True)
    e = jnp.exp(logits - m)                                               # (TM, 16) f32
    den = jnp.dot(e.astype(jnp.bfloat16), hsum_ref[...],                  # per-head sums
                  preferred_element_type=jnp.float32)                     # (TM, 16) f32
    inv = pl.reciprocal(jnp.maximum(den, 1e-20), approx=True)
    attn = e * inv                                                        # (TM, 16) f32

    # Assemble the lane-dense slab (one 128-wide output block -> single dense HBM writeback).
    tm = x.shape[0]
    slab_ref[:, VAL_OFF:LOC_OFF] = val
    slab_ref[:, LOC_OFF:ATT_OFF] = loc
    slab_ref[:, ATT_OFF:PAD_OFF] = attn
    slab_ref[:, PAD_OFF:] = jnp.zeros((tm, SLAB_W - PAD_OFF), jnp.float32)


def agg_ffn_kernel(samp_ref, attn_ref, x_ref, e_ref, wf_ref, bo_ref, g1_ref, be1_ref,
                   w1_ref, b1_ref, w2_ref, b2_ref, g2_ref, be2_ref, out_ref):
    """expand(attn16) * samp -> @W_fused + bout -> residual -> norm1 -> FFN -> residual -> norm2.

    samp / attn arrive in bf16 (halved HBM read); the 16->128 attention expansion is a tiny
    bf16 MXU matmul in-kernel instead of a 512 B/row f32 HBM round trip.
    """
    attnx = jnp.dot(attn_ref[...], e_ref[...],
                    preferred_element_type=jnp.float32)                   # (TM, 128) f32
    weighted = (samp_ref[...].astype(jnp.float32) * attnx).astype(jnp.bfloat16)
    attn_out = (jnp.dot(weighted, wf_ref[...],
                        preferred_element_type=jnp.float32) + bo_ref[...])
    y = _layer_norm(x_ref[...] + attn_out, g1_ref[...], be1_ref[...])     # dropout1 = identity
    h = jnp.maximum(jnp.dot(y.astype(jnp.bfloat16), w1_ref[...],
                            preferred_element_type=jnp.float32) + b1_ref[...], 0.0)
    o2 = (jnp.dot(h.astype(jnp.bfloat16), w2_ref[...],
                  preferred_element_type=jnp.float32) + b2_ref[...])
    out_ref[...] = _layer_norm(y + o2, g2_ref[...], be2_ref[...])


# ----------------------------- pallas_call wrappers -----------------------------
def _round_up(a, b):
    return -(-a // b) * b


def _row_tile(m):
    # Whole-M single block when small (amortizes per-step pipeline overhead completely);
    # otherwise tiles of at most MAX_ROW_TILE rows with an EVEN grid length >= 2 so both
    # TensorCores on v7x get equal work.
    if m <= 256:
        return m
    nblk = 2 * max(1, -(-m // (2 * MAX_ROW_TILE)))      # even block count >= 2
    return _round_up(-(-m // nblk), 16)


def _pad_rows(a, mp):
    return a if a.shape[0] == mp else jnp.pad(a, ((0, mp - a.shape[0]), (0, 0)))


def _row_spec(tm, cols):
    return pl.BlockSpec((tm, cols), lambda i: (i, 0))


def _full_spec(shape):
    return pl.BlockSpec(shape, lambda i: (0,) * len(shape))


def proj_call(x_bf16, pos_bf16, ref2, p, consts):
    M, C = x_bf16.shape
    tm = _row_tile(M)
    mp = pl.cdiv(M, tm) * tm
    xp, pp, rp = (_pad_rows(a, mp) for a in (x_bf16, pos_bf16, ref2))
    slab = pl.pallas_call(
        proj_kernel,
        grid=(mp // tm,),
        in_specs=[_row_spec(tm, C), _row_spec(tm, C), _row_spec(tm, OFF_DIM),
                  _full_spec((C, C)), _full_spec((1, C)),
                  _full_spec((C, QA_DIM)), _full_spec((1, QA_DIM)),
                  _full_spec((1, OFF_DIM)), _full_spec((AW_DIM, AW_DIM))],
        out_specs=_row_spec(tm, SLAB_W),
        out_shape=jax.ShapeDtypeStruct((mp, SLAB_W), jnp.float32),
        compiler_params=_CPARAMS,
    )(xp, pp, rp, p['wv'], p['bv'], p['wqa'], p['bqa'],
      consts['inv_norm'], consts['HSUM'])
    return slab[:M]


def agg_ffn_call(samp_bf16, attn_bf16, x2, p, consts):
    M, C = x2.shape
    tm = _row_tile(M)
    mp = pl.cdiv(M, tm) * tm
    sp, ap, xp = (_pad_rows(a, mp) for a in (samp_bf16, attn_bf16, x2))
    out = pl.pallas_call(
        agg_ffn_kernel,
        grid=(mp // tm,),
        in_specs=[_row_spec(tm, SW), _row_spec(tm, AW_DIM), _row_spec(tm, C),
                  _full_spec((AW_DIM, SW)),
                  _full_spec((SW, C)), _full_spec((1, C)),
                  _full_spec((1, C)), _full_spec((1, C)),
                  _full_spec((C, FF_DIM)), _full_spec((1, FF_DIM)),
                  _full_spec((FF_DIM, C)), _full_spec((1, C)),
                  _full_spec((1, C)), _full_spec((1, C))],
        out_specs=_row_spec(tm, C),
        out_shape=jax.ShapeDtypeStruct((mp, C), jnp.float32),
        compiler_params=_CPARAMS,
    )(sp, ap, xp, consts['E'], p['wfused'], p['bout'], p['g1'], p['be1'],
      p['w1'], p['b1'], p['w2'], p['b2'], p['g2'], p['be2'])
    return out[:M]


# ----------------------------- JAX glue (sampling / setup) -----------------------------
def build_trilinear_matrix(loc_l, D_, H_, W_):
    """Dense trilinear-interpolation weight matrix (one-hot matmul gather form).

    loc_l: (B, S, nH, P, 3) normalized to [0,1], coords in (x, y, z) order.
    Matches torch grid_sample 3D, mode='bilinear', padding_mode='zeros', align_corners=False.
    Returns (B, S, nH, P, D*H*W) float32 weights.
    """
    g = 2.0 * loc_l - 1.0
    ix = ((g[..., 0] + 1.0) * W_ - 1.0) * 0.5
    iy = ((g[..., 1] + 1.0) * H_ - 1.0) * 0.5
    iz = ((g[..., 2] + 1.0) * D_ - 1.0) * 0.5
    x0, y0, z0 = jnp.floor(ix), jnp.floor(iy), jnp.floor(iz)
    n_tot = D_ * H_ * W_
    n_idx = jnp.arange(n_tot, dtype=jnp.int32)
    wm = jnp.zeros(loc_l.shape[:-1] + (n_tot,), jnp.float32)
    for dx in (0.0, 1.0):
        for dy in (0.0, 1.0):
            for dz in (0.0, 1.0):
                xc, yc, zc = x0 + dx, y0 + dy, z0 + dz
                wx = 1.0 - jnp.abs(ix - xc)
                wy = 1.0 - jnp.abs(iy - yc)
                wz = 1.0 - jnp.abs(iz - zc)
                valid = ((xc >= 0) & (xc <= W_ - 1) &
                         (yc >= 0) & (yc <= H_ - 1) &
                         (zc >= 0) & (zc <= D_ - 1))
                xi = jnp.clip(xc, 0, W_ - 1).astype(jnp.int32)
                yi = jnp.clip(yc, 0, H_ - 1).astype(jnp.int32)
                zi = jnp.clip(zc, 0, D_ - 1).astype(jnp.int32)
                flat = (zi * H_ + yi) * W_ + xi
                w = (wx * wy * wz) * valid.astype(jnp.float32)
                wm = wm + w[..., None] * (flat[..., None] == n_idx).astype(jnp.float32)
    return wm


def compute_unmasked_ratio(mask):
    # mask: (B, D, H, W) bool, True = padded.  Returns (B, 3) ratios in (x, y, z) order.
    _, D_, H_, W_ = mask.shape
    vd = jnp.sum(~mask[:, :, 0, 0], axis=1).astype(jnp.float32) / D_
    vh = jnp.sum(~mask[:, 0, :, 0], axis=1).astype(jnp.float32) / H_
    vw = jnp.sum(~mask[:, 0, 0, :], axis=1).astype(jnp.float32) / W_
    return jnp.stack([vw, vh, vd], axis=-1)


def get_reference_points(shapes, valid_ratios):
    ref_list = []
    for lvl, (D_, H_, W_) in enumerate(shapes):
        rz, ry, rx = jnp.meshgrid(
            jnp.linspace(0.5, D_ - 0.5, D_, dtype=jnp.float32),
            jnp.linspace(0.5, H_ - 0.5, H_, dtype=jnp.float32),
            jnp.linspace(0.5, W_ - 0.5, W_, dtype=jnp.float32),
            indexing='ij')
        rz = rz.reshape(-1)[None] / (valid_ratios[:, None, lvl, 2] * D_)
        ry = ry.reshape(-1)[None] / (valid_ratios[:, None, lvl, 1] * H_)
        rx = rx.reshape(-1)[None] / (valid_ratios[:, None, lvl, 0] * W_)
        ref_list.append(jnp.stack((rx, ry, rz), -1))
    ref = jnp.concatenate(ref_list, 1)                     # (B, S, 3)
    return ref[:, :, None] * valid_ratios[:, None]         # (B, S, L, 3)


def build_constants(shapes):
    """Static helper matrices baked from the (compile-time) level shapes."""
    # 1 / normalizer per flat (h, l, p, xyz) offset index.
    inv_norm = np.zeros((1, OFF_DIM), np.float32)
    lvl_idx = np.zeros((OFF_DIM,), np.int32)
    coord_idx = np.zeros((OFF_DIM,), np.int32)
    for j in range(OFF_DIM):
        grp = j // 3
        lvl = (grp // N_POINTS) % N_LEVELS
        c = j % 3
        d_, h_, w_ = shapes[lvl]
        inv_norm[0, j] = 1.0 / float((w_, h_, d_)[c])
        lvl_idx[j] = lvl
        coord_idx[j] = c
    # E: copies each of the 16 attention weights HEAD_DIM times (16 -> 128), used in agg_ffn.
    # HSUM: 16x16 per-head group-sum matrix used for the softmax denominator in proj.
    e_mat = np.zeros((AW_DIM, SW), np.float32)
    hsum = np.zeros((AW_DIM, AW_DIM), np.float32)
    for g in range(AW_DIM):
        for j in range(SW):
            if j // HEAD_DIM == g:
                e_mat[g, j] = 1.0
        for j in range(AW_DIM):
            if j // LP == g // LP:
                hsum[g, j] = 1.0
    return dict(inv_norm=jnp.asarray(inv_norm),
                E=jnp.asarray(e_mat, jnp.bfloat16),
                HSUM=jnp.asarray(hsum, jnp.bfloat16),
                lvl_idx=lvl_idx, coord_idx=coord_idx)


def prepare_layer_params(raw):
    """Fuse / cast raw per-layer parameters for the optimized kernels."""
    wqa = jnp.concatenate([raw['wo'], raw['wa']], axis=1)        # (C, 64)
    bqa = jnp.concatenate([raw['bo'], raw['ba']], axis=1)        # (1, 64)
    # W_fused = P @ W_out where P is the 0/1 head-expansion matrix; each row of P has one 1,
    # so this is an exact row-gather of W_out replicated LP times per head.
    rowmap = np.array([(j // (LP * HEAD_DIM)) * HEAD_DIM + (j % HEAD_DIM)
                       for j in range(SW)], np.int32)
    wfused = raw['wout'][rowmap]                                 # (128, C)
    return dict(
        wv=raw['wv'].astype(jnp.bfloat16), bv=raw['bv'],
        wqa=wqa.astype(jnp.bfloat16), bqa=bqa,
        wfused=wfused.astype(jnp.bfloat16), bout=raw['bout'],
        g1=raw['g1'], be1=raw['be1'],
        w1=raw['w1'].astype(jnp.bfloat16), b1=raw['b1'],
        w2=raw['w2'].astype(jnp.bfloat16), b2=raw['b2'],
        g2=raw['g2'], be2=raw['be2'],
    )


def encoder_layer(x2, pos2_bf16, ref2, shapes, level_start, p, consts, B, S):
    """One MSDeformAttnTransformerEncoderLayer forward (eval mode), token-major 2-D view."""
    M, C = x2.shape

    # --- value_proj + fused offsets/attn matmul + softmax + sampling locations (Pallas) ---
    slab = proj_call(x2.astype(jnp.bfloat16), pos2_bf16, ref2, p, consts)
    value2 = slab[:, VAL_OFF:LOC_OFF]                            # (M, 32) f32
    loc48 = slab[:, LOC_OFF:ATT_OFF]                             # (M, 48) f32
    attn16 = slab[:, ATT_OFF:PAD_OFF].astype(jnp.bfloat16)       # (M, 16) bf16
    value = value2.reshape(B, S, N_HEADS, HEAD_DIM)
    loc = loc48.reshape(B, S, N_HEADS, N_LEVELS, N_POINTS, 3)

    # --- trilinear sampling as a one-hot weight-matrix einsum per level (JAX/XLA glue) ---
    # TODO(synk): replace with an 8-corner gather (or in-kernel VMEM-resident value) for
    # production voxel counts; the dense form is only viable for tiny levels.
    sampled_per_level = []
    for lvl, (D_, H_, W_) in enumerate(shapes):
        st = level_start[lvl]
        n_l = D_ * H_ * W_
        v_l = value[:, st:st + n_l]                              # (B, N_l, nH, Dh)
        wm = build_trilinear_matrix(loc[:, :, :, lvl], D_, H_, W_)
        sampled_per_level.append(jnp.einsum('bshpn,bnhd->bshpd', wm, v_l))
    sampled = jnp.stack(sampled_per_level, axis=3)               # (B, S, nH, L, P, Dh)
    samp_flat = sampled.reshape(M, SW).astype(jnp.bfloat16)      # (M, 128) bf16

    # --- aggregation + output_proj + residual + norm1 + FFN + residual + norm2 (Pallas) ---
    return agg_ffn_call(samp_flat, attn16, x2, p, consts)


def encoder_forward(features, pos_embeddings, layer_params, level_embed):
    """MSDeformAttnTransformerEncoder.forward with masks=None (zero padding masks)."""
    B, C = features[0].shape[0], features[0].shape[1]
    shapes = [tuple(int(s) for s in f.shape[2:]) for f in features]          # (D, H, W)
    sizes = [d * h * w for (d, h, w) in shapes]
    level_start = [0] + list(np.cumsum(sizes)[:-1])
    feature_shapes = jnp.asarray(shapes, jnp.int32)
    level_start_index = jnp.asarray(level_start, jnp.int32)

    feats = jnp.concatenate(
        [f.reshape(B, C, -1).transpose(0, 2, 1) for f in features], axis=1)   # (B, S, C)
    pos = jnp.concatenate(
        [p.reshape(B, C, -1).transpose(0, 2, 1) + level_embed[lvl][None, None, :]
         for lvl, p in enumerate(pos_embeddings)], axis=1)
    S = feats.shape[1]
    M = B * S

    masks = [jnp.zeros((B, d, h, w), bool) for (d, h, w) in shapes]           # get_padding_mask(None)
    valid_ratios = jnp.stack([compute_unmasked_ratio(m) for m in masks], 1)   # (B, L, 3) == 1.0
    ref_pts = get_reference_points(shapes, valid_ratios)                      # (B, S, L, 3)

    consts = build_constants(shapes)
    # Reference points expanded to the flat (h, l, p, xyz) offset layout, computed once.
    ref2 = ref_pts[:, :, consts['lvl_idx'], consts['coord_idx']].reshape(M, OFF_DIM)

    x2 = feats.reshape(M, C)
    pos2_bf16 = pos.reshape(M, C).astype(jnp.bfloat16)

    prepared = [prepare_layer_params(p) for p in layer_params]
    for p in prepared:
        x2 = encoder_layer(x2, pos2_bf16, ref2, shapes, level_start, p, consts, B, S)
    return x2.reshape(B, S, C), feature_shapes, level_start_index


# ----------------------------- parameter init (deterministic, synthetic) -----------------------------
def init_layer_params(key):
    ks = jax.random.split(key, 12)
    s = 0.05
    w = lambda k, shape: jax.random.normal(k, shape, jnp.float32) * s
    C, F = EMBED_DIM, FF_DIM
    return dict(
        wv=w(ks[0], (C, C)),        bv=w(ks[1], (1, C)),
        wo=w(ks[2], (C, OFF_DIM)),  bo=w(ks[3], (1, OFF_DIM)),
        wa=w(ks[4], (C, AW_DIM)),   ba=w(ks[5], (1, AW_DIM)),
        wout=w(ks[6], (C, C)),      bout=w(ks[7], (1, C)),
        g1=jnp.ones((1, C), jnp.float32), be1=jnp.zeros((1, C), jnp.float32),
        w1=w(ks[8], (C, F)),        b1=w(ks[9], (1, F)),
        w2=w(ks[10], (F, C)),       b2=w(ks[11], (1, C)),
        g2=jnp.ones((1, C), jnp.float32), be2=jnp.zeros((1, C), jnp.float32),
    )


# ----------------------------- main -----------------------------
if __name__ == "__main__":
    key = jax.random.PRNGKey(0)
    B = 2
    level_shapes = [(2, 4, 4), (2, 2, 2)]      # (D, H, W) per feature level -> S = 40

    n = len(level_shapes)
    keys = jax.random.split(key, 2 * n + NUM_LAYERS + 1)
    features = [jax.random.normal(keys[i], (B, EMBED_DIM, d, h, w), jnp.float32)
                for i, (d, h, w) in enumerate(level_shapes)]
    pos_embeddings = [jax.random.normal(keys[n + i], (B, EMBED_DIM, d, h, w), jnp.float32)
                      for i, (d, h, w) in enumerate(level_shapes)]
    layer_params = [init_layer_params(keys[2 * n + i]) for i in range(NUM_LAYERS)]
    level_embed = jax.random.normal(keys[-1], (n, EMBED_DIM), jnp.float32)

    run = jax.jit(encoder_forward)
    memory, feature_shapes, level_start_index = run(
        features, pos_embeddings, layer_params, level_embed)

    jax.block_until_ready(memory)
    assert memory.shape == (B, sum(d * h * w for d, h, w in level_shapes), EMBED_DIM)
    print("KERNEL_OK")
</pallas_src>

<mosaic_0001>
module attributes {stable_mosaic.version = 11 : i64} {
  func.func @proj_kernel(%arg0: i32, %arg1: memref<80x32xbf16, #tpu.memory_space<vmem>>, %arg2: memref<80x32xbf16, #tpu.memory_space<vmem>>, %arg3: memref<80x48xf32, #tpu.memory_space<vmem>>, %arg4: memref<32x32xbf16, #tpu.memory_space<vmem>>, %arg5: memref<1x32xf32, #tpu.memory_space<vmem>>, %arg6: memref<32x64xbf16, #tpu.memory_space<vmem>>, %arg7: memref<1x64xf32, #tpu.memory_space<vmem>>, %arg8: memref<1x48xf32, #tpu.memory_space<vmem>>, %arg9: memref<16x16xbf16, #tpu.memory_space<vmem>>, %arg10: memref<80x128xf32, #tpu.memory_space<vmem>>) attributes {dimension_semantics = [#tpu.dimension_semantics<parallel>], iteration_bounds = array<i64: 1>, scalar_prefetch = 0 : i64, scratch_operands = 0 : i64, tpu.core_type = #tpu.core_type<tc>, window_params = [{transform_indices = @transform_0, window_bounds = array<i64: 80, 32>}, {transform_indices = @transform_1, window_bounds = array<i64: 80, 32>}, {transform_indices = @transform_2, window_bounds = array<i64: 80, 48>}, {pipeline_mode = #tpu.pipeline_mode<synchronous>, transform_indices = @transform_3, window_bounds = array<i64: 32, 32>}, {pipeline_mode = #tpu.pipeline_mode<synchronous>, transform_indices = @transform_4, window_bounds = array<i64: 1, 32>}, {pipeline_mode = #tpu.pipeline_mode<synchronous>, transform_indices = @transform_5, window_bounds = array<i64: 32, 64>}, {pipeline_mode = #tpu.pipeline_mode<synchronous>, transform_indices = @transform_6, window_bounds = array<i64: 1, 64>}, {pipeline_mode = #tpu.pipeline_mode<synchronous>, transform_indices = @transform_7, window_bounds = array<i64: 1, 48>}, {pipeline_mode = #tpu.pipeline_mode<synchronous>, transform_indices = @transform_8, window_bounds = array<i64: 16, 16>}, {transform_indices = @transform_9, window_bounds = array<i64: 80, 128>}]} {
    %c0 = arith.constant 0 : index
    %c0_0 = arith.constant 0 : index
    %0 = vector.load %arg1[%c0, %c0_0] : memref<80x32xbf16, #tpu.memory_space<vmem>>, vector<80x32xbf16>
    %c0_1 = arith.constant 0 : index
    %c0_2 = arith.constant 0 : index
    %1 = vector.load %arg2[%c0_1, %c0_2] : memref<80x32xbf16, #tpu.memory_space<vmem>>, vector<80x32xbf16>
    %2 = arith.addf %0, %1 : vector<80x32xbf16>
    %c0_3 = arith.constant 0 : index
    %c0_4 = arith.constant 0 : index
    %3 = vector.load %arg4[%c0_3, %c0_4] : memref<32x32xbf16, #tpu.memory_space<vmem>>, vector<32x32xbf16>
    %cst = arith.constant dense<0.000000e+00> : vector<80x32xf32>
    %4 = tpu.matmul %0, %3, %cst {dimension_numbers = #tpu.dot_dimension_numbers<[1], [0], [0], [1], [0, 0, 1, 1], [], []>} : vector<80x32xbf16>, vector<32x32xbf16>, vector<80x32xf32> -> vector<80x32xf32>
    %c0_5 = arith.constant 0 : index
    %c0_6 = arith.constant 0 : index
    %5 = vector.load %arg5[%c0_5, %c0_6] : memref<1x32xf32, #tpu.memory_space<vmem>>, vector<1x32xf32>
    %6 = vector.broadcast %5 : vector<1x32xf32> to vector<80x32xf32>
    %7 = arith.addf %4, %6 : vector<80x32xf32>
    %c0_7 = arith.constant 0 : index
    %c0_8 = arith.constant 0 : index
    %8 = vector.load %arg6[%c0_7, %c0_8] : memref<32x64xbf16, #tpu.memory_space<vmem>>, vector<32x64xbf16>
    %cst_9 = arith.constant dense<0.000000e+00> : vector<80x64xf32>
    %9 = tpu.matmul %2, %8, %cst_9 {dimension_numbers = #tpu.dot_dimension_numbers<[1], [0], [0], [1], [0, 0, 1, 1], [], []>} : vector<80x32xbf16>, vector<32x64xbf16>, vector<80x64xf32> -> vector<80x64xf32>
    %c0_10 = arith.constant 0 : index
    %c0_11 = arith.constant 0 : index
    %10 = vector.load %arg7[%c0_10, %c0_11] : memref<1x64xf32, #tpu.memory_space<vmem>>, vector<1x64xf32>
    %11 = vector.broadcast %10 : vector<1x64xf32> to vector<80x64xf32>
    %12 = arith.addf %9, %11 : vector<80x64xf32>
    %13 = vector.extract_strided_slice %12 {offsets = [0, 0], sizes = [80, 48], strides = [1, 1]} : vector<80x64xf32> to vector<80x48xf32>
    %14 = vector.extract_strided_slice %12 {offsets = [0, 48], sizes = [80, 16], strides = [1, 1]} : vector<80x64xf32> to vector<80x16xf32>
    %c0_12 = arith.constant 0 : index
    %c0_13 = arith.constant 0 : index
    %15 = vector.load %arg8[%c0_12, %c0_13] : memref<1x48xf32, #tpu.memory_space<vmem>>, vector<1x48xf32>
    %16 = vector.broadcast %15 : vector<1x48xf32> to vector<80x48xf32>
    %17 = arith.mulf %13, %16 : vector<80x48xf32>
    %c0_14 = arith.constant 0 : index
    %c0_15 = arith.constant 0 : index
    %18 = vector.load %arg3[%c0_14, %c0_15] : memref<80x48xf32, #tpu.memory_space<vmem>>, vector<80x48xf32>
    %19 = arith.addf %17, %18 : vector<80x48xf32>
    %cst_16 = arith.constant dense<0xFF800000> : vector<80xf32>
    %20 = vector.multi_reduction <maximumf>, %14, %cst_16 [1] : vector<80x16xf32> to vector<80xf32>
    %21 = vector.shape_cast %20 : vector<80xf32> to vector<80x1xf32>
    %22 = vector.broadcast %21 : vector<80x1xf32> to vector<80x16xf32>
    %23 = arith.subf %14, %22 : vector<80x16xf32>
    %24 = math.exp %23 : vector<80x16xf32>
    %25 = arith.truncf %24 : vector<80x16xf32> to vector<80x16xbf16>
    %c0_17 = arith.constant 0 : index
    %c0_18 = arith.constant 0 : index
    %26 = vector.load %arg9[%c0_17, %c0_18] : memref<16x16xbf16, #tpu.memory_space<vmem>>, vector<16x16xbf16>
    %cst_19 = arith.constant dense<0.000000e+00> : vector<80x16xf32>
    %27 = tpu.matmul %25, %26, %cst_19 {dimension_numbers = #tpu.dot_dimension_numbers<[1], [0], [0], [1], [0, 0, 1, 1], [], []>} : vector<80x16xbf16>, vector<16x16xbf16>, vector<80x16xf32> -> vector<80x16xf32>
    %cst_20 = arith.constant 9.99999968E-21 : f32
    %28 = vector.broadcast %cst_20 : f32 to vector<80x16xf32>
    %29 = arith.maximumf %27, %28 : vector<80x16xf32>
    %30 = tpu.reciprocal %29 {approx = true} : vector<80x16xf32> -> vector<80x16xf32>
    %31 = arith.mulf %24, %30 : vector<80x16xf32>
    %c0_21 = arith.constant 0 : index
    %c0_22 = arith.constant 0 : index
    %32 = vector.load %arg10[%c0_21, %c0_22] : memref<80x128xf32, #tpu.memory_space<vmem>>, vector<80x32xf32>
    tpu.vector_store %arg10[%c0_21, %c0_22], %7 {strides = array<i32>} : memref<80x128xf32, #tpu.memory_space<vmem>>, vector<80x32xf32>,
    %c0_23 = arith.constant 0 : index
    %c32 = arith.constant 32 : index
    %33 = vector.load %arg10[%c0_23, %c32] : memref<80x128xf32, #tpu.memory_space<vmem>>, vector<80x48xf32>
    tpu.vector_store %arg10[%c0_23, %c32], %19 {strides = array<i32>} : memref<80x128xf32, #tpu.memory_space<vmem>>, vector<80x48xf32>,
    %c0_24 = arith.constant 0 : index
    %c80 = arith.constant 80 : index
    %34 = vector.load %arg10[%c0_24, %c80] : memref<80x128xf32, #tpu.memory_space<vmem>>, vector<80x16xf32>
    tpu.vector_store %arg10[%c0_24, %c80], %31 {strides = array<i32>} : memref<80x128xf32, #tpu.memory_space<vmem>>, vector<80x16xf32>,
    %cst_25 = arith.constant 0.000000e+00 : f32
    %35 = vector.broadcast %cst_25 : f32 to vector<80x32xf32>
    %c0_26 = arith.constant 0 : index
    %c96 = arith.constant 96 : index
    %36 = vector.load %arg10[%c0_26, %c96] : memref<80x128xf32, #tpu.memory_space<vmem>>, vector<80x32xf32>
    tpu.vector_store %arg10[%c0_26, %c96], %35 {strides = array<i32>} : memref<80x128xf32, #tpu.memory_space<vmem>>, vector<80x32xf32>,
    return
  }
  func.func @transform_0(%arg0: i32) -> (i32, i32) {
    %c0_i32 = arith.constant 0 : i32
    %c0_i32_0 = arith.constant 0 : i32
    return %arg0, %c0_i32 : i32, i32
  }
  func.func @transform_1(%arg0: i32) -> (i32, i32) {
    %c0_i32 = arith.constant 0 : i32
    %c0_i32_0 = arith.constant 0 : i32
    return %arg0, %c0_i32 : i32, i32
  }
  func.func @transform_2(%arg0: i32) -> (i32, i32) {
    %c0_i32 = arith.constant 0 : i32
    %c0_i32_0 = arith.constant 0 : i32
    return %arg0, %c0_i32 : i32, i32
  }
  func.func @transform_3(%arg0: i32) -> (i32, i32) {
    %c0_i32 = arith.constant 0 : i32
    %c0_i32_0 = arith.constant 0 : i32
    %c0_i32_1 = arith.constant 0 : i32
    return %c0_i32, %c0_i32_0 : i32, i32
  }
  func.func @transform_4(%arg0: i32) -> (i32, i32) {
    %c0_i32 = arith.constant 0 : i32
    %c0_i32_0 = arith.constant 0 : i32
    %c0_i32_1 = arith.constant 0 : i32
    return %c0_i32, %c0_i32_0 : i32, i32
  }
  func.func @transform_5(%arg0: i32) -> (i32, i32) {
    %c0_i32 = arith.constant 0 : i32
    %c0_i32_0 = arith.constant 0 : i32
    %c0_i32_1 = arith.constant 0 : i32
    return %c0_i32, %c0_i32_0 : i32, i32
  }
  func.func @transform_6(%arg0: i32) -> (i32, i32) {
    %c0_i32 = arith.constant 0 : i32
    %c0_i32_0 = arith.constant 0 : i32
    %c0_i32_1 = arith.constant 0 : i32
    return %c0_i32, %c0_i32_0 : i32, i32
  }
  func.func @transform_7(%arg0: i32) -> (i32, i32) {
    %c0_i32 = arith.constant 0 : i32
    %c0_i32_0 = arith.constant 0 : i32
    %c0_i32_1 = arith.constant 0 : i32
    return %c0_i32, %c0_i32_0 : i32, i32
  }
  func.func @transform_8(%arg0: i32) -> (i32, i32) {
    %c0_i32 = arith.constant 0 : i32
    %c0_i32_0 = arith.constant 0 : i32
    %c0_i32_1 = arith.constant 0 : i32
    return %c0_i32, %c0_i32_0 : i32, i32
  }
  func.func @transform_9(%arg0: i32) -> (i32, i32) {
    %c0_i32 = arith.constant 0 : i32
    %c0_i32_0 = arith.constant 0 : i32
    return %arg0, %c0_i32 : i32, i32
  }
}

module attributes {stable_mosaic.version = 11 : i64} {
  func.func @agg_ffn_kernel(%arg0: i32, %arg1: memref<80x128xbf16, #tpu.memory_space<vmem>>, %arg2: memref<80x16xbf16, #tpu.memory_space<vmem>>, %arg3: memref<80x32xf32, #tpu.memory_space<vmem>>, %arg4: memref<16x128xbf16, #tpu.memory_space<vmem>>, %arg5: memref<128x32xbf16, #tpu.memory_space<vmem>>, %arg6: memref<1x32xf32, #tpu.memory_space<vmem>>, %arg7: memref<1x32xf32, #tpu.memory_space<vmem>>, %arg8: memref<1x32xf32, #tpu.memory_space<vmem>>, %arg9: memref<32x64xbf16, #tpu.memory_space<vmem>>, %arg10: memref<1x64xf32, #tpu.memory_space<vmem>>, %arg11: memref<64x32xbf16, #tpu.memory_space<vmem>>, %arg12: memref<1x32xf32, #tpu.memory_space<vmem>>, %arg13: memref<1x32xf32, #tpu.memory_space<vmem>>, %arg14: memref<1x32xf32, #tpu.memory_space<vmem>>, %arg15: memref<80x32xf32, #tpu.memory_space<vmem>>) attributes {dimension_semantics = [#tpu.dimension_semantics<parallel>], iteration_bounds = array<i64: 1>, scalar_prefetch = 0 : i64, scratch_operands = 0 : i64, tpu.core_type = #tpu.core_type<tc>, window_params = [{transform_indices = @transform_0, window_bounds = array<i64: 80, 128>}, {transform_indices = @transform_1, window_bounds = array<i64: 80, 16>}, {transform_indices = @transform_2, window_bounds = array<i64: 80, 32>}, {pipeline_mode = #tpu.pipeline_mode<synchronous>, transform_indices = @transform_3, window_bounds = array<i64: 16, 128>}, {pipeline_mode = #tpu.pipeline_mode<synchronous>, transform_indices = @transform_4, window_bounds = array<i64: 128, 32>}, {pipeline_mode = #tpu.pipeline_mode<synchronous>, transform_indices = @transform_5, window_bounds = array<i64: 1, 32>}, {pipeline_mode = #tpu.pipeline_mode<synchronous>, transform_indices = @transform_6, window_bounds = array<i64: 1, 32>}, {pipeline_mode = #tpu.pipeline_mode<synchronous>, transform_indices = @transform_7, window_bounds = array<i64: 1, 32>}, {pipeline_mode = #tpu.pipeline_mode<synchronous>, transform_indices = @transform_8, window_bounds = array<i64: 32, 64>}, {pipeline_mode = #tpu.pipeline_mode<synchronous>, transform_indices = @transform_9, window_bounds = array<i64: 1, 64>}, {pipeline_mode = #tpu.pipeline_mode<synchronous>, transform_indices = @transform_10, window_bounds = array<i64: 64, 32>}, {pipeline_mode = #tpu.pipeline_mode<synchronous>, transform_indices = @transform_11, window_bounds = array<i64: 1, 32>}, {pipeline_mode = #tpu.pipeline_mode<synchronous>, transform_indices = @transform_12, window_bounds = array<i64: 1, 32>}, {pipeline_mode = #tpu.pipeline_mode<synchronous>, transform_indices = @transform_13, window_bounds = array<i64: 1, 32>}, {transform_indices = @transform_14, window_bounds = array<i64: 80, 32>}]} {
    %c0 = arith.constant 0 : index
    %c0_0 = arith.constant 0 : index
    %0 = vector.load %arg2[%c0, %c0_0] : memref<80x16xbf16, #tpu.memory_space<vmem>>, vector<80x16xbf16>
    %c0_1 = arith.constant 0 : index
    %c0_2 = arith.constant 0 : index
    %1 = vector.load %arg4[%c0_1, %c0_2] : memref<16x128xbf16, #tpu.memory_space<vmem>>, vector<16x128xbf16>
    %cst = arith.constant dense<0.000000e+00> : vector<80x128xf32>
    %2 = tpu.matmul %0, %1, %cst {dimension_numbers = #tpu.dot_dimension_numbers<[1], [0], [0], [1], [0, 0, 1, 1], [], []>} : vector<80x16xbf16>, vector<16x128xbf16>, vector<80x128xf32> -> vector<80x128xf32>
    %c0_3 = arith.constant 0 : index
    %c0_4 = arith.constant 0 : index
    %3 = vector.load %arg1[%c0_3, %c0_4] : memref<80x128xbf16, #tpu.memory_space<vmem>>, vector<80x128xbf16>
    %4 = arith.extf %3 : vector<80x128xbf16> to vector<80x128xf32>
    %5 = arith.mulf %4, %2 : vector<80x128xf32>
    %6 = arith.truncf %5 : vector<80x128xf32> to vector<80x128xbf16>
    %c0_5 = arith.constant 0 : index
    %c0_6 = arith.constant 0 : index
    %7 = vector.load %arg5[%c0_5, %c0_6] : memref<128x32xbf16, #tpu.memory_space<vmem>>, vector<128x32xbf16>
    %cst_7 = arith.constant dense<0.000000e+00> : vector<80x32xf32>
    %8 = tpu.matmul %6, %7, %cst_7 {dimension_numbers = #tpu.dot_dimension_numbers<[1], [0], [0], [1], [0, 0, 1, 1], [], []>} : vector<80x128xbf16>, vector<128x32xbf16>, vector<80x32xf32> -> vector<80x32xf32>
    %c0_8 = arith.constant 0 : index
    %c0_9 = arith.constant 0 : index
    %9 = vector.load %arg6[%c0_8, %c0_9] : memref<1x32xf32, #tpu.memory_space<vmem>>, vector<1x32xf32>
    %10 = vector.broadcast %9 : vector<1x32xf32> to vector<80x32xf32>
    %11 = arith.addf %8, %10 : vector<80x32xf32>
    %c0_10 = arith.constant 0 : index
    %c0_11 = arith.constant 0 : index
    %12 = vector.load %arg3[%c0_10, %c0_11] : memref<80x32xf32, #tpu.memory_space<vmem>>, vector<80x32xf32>
    %13 = arith.addf %12, %11 : vector<80x32xf32>
    %c0_12 = arith.constant 0 : index
    %c0_13 = arith.constant 0 : index
    %14 = vector.load %arg7[%c0_12, %c0_13] : memref<1x32xf32, #tpu.memory_space<vmem>>, vector<1x32xf32>
    %c0_14 = arith.constant 0 : index
    %c0_15 = arith.constant 0 : index
    %15 = vector.load %arg8[%c0_14, %c0_15] : memref<1x32xf32, #tpu.memory_space<vmem>>, vector<1x32xf32>
    %cst_16 = arith.constant dense<0.000000e+00> : vector<80xf32>
    %16 = vector.multi_reduction <add>, %13, %cst_16 [1] : vector<80x32xf32> to vector<80xf32>
    %17 = vector.shape_cast %16 : vector<80xf32> to vector<80x1xf32>
    %cst_17 = arith.constant 3.200000e+01 : f32
    %18 = vector.broadcast %cst_17 : f32 to vector<80x1xf32>
    %19 = arith.divf %17, %18 : vector<80x1xf32>
    %20 = vector.broadcast %19 : vector<80x1xf32> to vector<80x32xf32>
    %21 = arith.subf %13, %20 : vector<80x32xf32>
    %22 = arith.mulf %21, %21 : vector<80x32xf32>
    %cst_18 = arith.constant dense<0.000000e+00> : vector<80xf32>
    %23 = vector.multi_reduction <add>, %22, %cst_18 [1] : vector<80x32xf32> to vector<80xf32>
    %24 = vector.shape_cast %23 : vector<80xf32> to vector<80x1xf32>
    %cst_19 = arith.constant 3.200000e+01 : f32
    %25 = vector.broadcast %cst_19 : f32 to vector<80x1xf32>
    %26 = arith.divf %24, %25 : vector<80x1xf32>
    %27 = vector.broadcast %19 : vector<80x1xf32> to vector<80x32xf32>
    %28 = arith.subf %13, %27 : vector<80x32xf32>
    %cst_20 = arith.constant 9.99999974E-6 : f32
    %29 = vector.broadcast %cst_20 : f32 to vector<80x1xf32>
    %30 = arith.addf %26, %29 : vector<80x1xf32>
    %31 = math.rsqrt %30 : vector<80x1xf32>
    %32 = vector.broadcast %31 : vector<80x1xf32> to vector<80x32xf32>
    %33 = arith.mulf %28, %32 : vector<80x32xf32>
    %34 = vector.broadcast %14 : vector<1x32xf32> to vector<80x32xf32>
    %35 = arith.mulf %33, %34 : vector<80x32xf32>
    %36 = vector.broadcast %15 : vector<1x32xf32> to vector<80x32xf32>
    %37 = arith.addf %35, %36 : vector<80x32xf32>
    %38 = arith.truncf %37 : vector<80x32xf32> to vector<80x32xbf16>
    %c0_21 = arith.constant 0 : index
    %c0_22 = arith.constant 0 : index
    %39 = vector.load %arg9[%c0_21, %c0_22] : memref<32x64xbf16, #tpu.memory_space<vmem>>, vector<32x64xbf16>
    %cst_23 = arith.constant dense<0.000000e+00> : vector<80x64xf32>
    %40 = tpu.matmul %38, %39, %cst_23 {dimension_numbers = #tpu.dot_dimension_numbers<[1], [0], [0], [1], [0, 0, 1, 1], [], []>} : vector<80x32xbf16>, vector<32x64xbf16>, vector<80x64xf32> -> vector<80x64xf32>
    %c0_24 = arith.constant 0 : index
    %c0_25 = arith.constant 0 : index
    %41 = vector.load %arg10[%c0_24, %c0_25] : memref<1x64xf32, #tpu.memory_space<vmem>>, vector<1x64xf32>
    %42 = vector.broadcast %41 : vector<1x64xf32> to vector<80x64xf32>
    %43 = arith.addf %40, %42 : vector<80x64xf32>
    %cst_26 = arith.constant 0.000000e+00 : f32
    %44 = vector.broadcast %cst_26 : f32 to vector<80x64xf32>
    %45 = arith.maximumf %43, %44 : vector<80x64xf32>
    %46 = arith.truncf %45 : vector<80x64xf32> to vector<80x64xbf16>
    %c0_27 = arith.constant 0 : index
    %c0_28 = arith.constant 0 : index
    %47 = vector.load %arg11[%c0_27, %c0_28] : memref<64x32xbf16, #tpu.memory_space<vmem>>, vector<64x32xbf16>
    %cst_29 = arith.constant dense<0.000000e+00> : vector<80x32xf32>
    %48 = tpu.matmul %46, %47, %cst_29 {dimension_numbers = #tpu.dot_dimension_numbers<[1], [0], [0], [1], [0, 0, 1, 1], [], []>} : vector<80x64xbf16>, vector<64x32xbf16>, vector<80x32xf32> -> vector<80x32xf32>
    %c0_30 = arith.constant 0 : index
    %c0_31 = arith.constant 0 : index
    %49 = vector.load %arg12[%c0_30, %c0_31] : memref<1x32xf32, #tpu.memory_space<vmem>>, vector<1x32xf32>
    %50 = vector.broadcast %49 : vector<1x32xf32> to vector<80x32xf32>
    %51 = arith.addf %48, %50 : vector<80x32xf32>
    %52 = arith.addf %37, %51 : vector<80x32xf32>
    %c0_32 = arith.constant 0 : index
    %c0_33 = arith.constant 0 : index
    %53 = vector.load %arg13[%c0_32, %c0_33] : memref<1x32xf32, #tpu.memory_space<vmem>>, vector<1x32xf32>
    %c0_34 = arith.constant 0 : index
    %c0_35 = arith.constant 0 : index
    %54 = vector.load %arg14[%c0_34, %c0_35] : memref<1x32xf32, #tpu.memory_space<vmem>>, vector<1x32xf32>
    %cst_36 = arith.constant dense<0.000000e+00> : vector<80xf32>
    %55 = vector.multi_reduction <add>, %52, %cst_36 [1] : vector<80x32xf32> to vector<80xf32>
    %56 = vector.shape_cast %55 : vector<80xf32> to vector<80x1xf32>
    %cst_37 = arith.constant 3.200000e+01 : f32
    %57 = vector.broadcast %cst_37 : f32 to vector<80x1xf32>
    %58 = arith.divf %56, %57 : vector<80x1xf32>
    %59 = vector.broadcast %58 : vector<80x1xf32> to vector<80x32xf32>
    %60 = arith.subf %52, %59 : vector<80x32xf32>
    %61 = arith.mulf %60, %60 : vector<80x32xf32>
    %cst_38 = arith.constant dense<0.000000e+00> : vector<80xf32>
    %62 = vector.multi_reduction <add>, %61, %cst_38 [1] : vector<80x32xf32> to vector<80xf32>
    %63 = vector.shape_cast %62 : vector<80xf32> to vector<80x1xf32>
    %cst_39 = arith.constant 3.200000e+01 : f32
    %64 = vector.broadcast %cst_39 : f32 to vector<80x1xf32>
    %65 = arith.divf %63, %64 : vector<80x1xf32>
    %66 = vector.broadcast %58 : vector<80x1xf32> to vector<80x32xf32>
    %67 = arith.subf %52, %66 : vector<80x32xf32>
    %cst_40 = arith.constant 9.99999974E-6 : f32
    %68 = vector.broadcast %cst_40 : f32 to vector<80x1xf32>
    %69 = arith.addf %65, %68 : vector<80x1xf32>
    %70 = math.rsqrt %69 : vector<80x1xf32>
    %71 = vector.broadcast %70 : vector<80x1xf32> to vector<80x32xf32>
    %72 = arith.mulf %67, %71 : vector<80x32xf32>
    %73 = vector.broadcast %53 : vector<1x32xf32> to vector<80x32xf32>
    %74 = arith.mulf %72, %73 : vector<80x32xf32>
    %75 = vector.broadcast %54 : vector<1x32xf32> to vector<80x32xf32>
    %76 = arith.addf %74, %75 : vector<80x32xf32>
    %c0_41 = arith.constant 0 : index
    %c0_42 = arith.constant 0 : index
    %77 = vector.load %arg15[%c0_41, %c0_42] : memref<80x32xf32, #tpu.memory_space<vmem>>, vector<80x32xf32>
    tpu.vector_store %arg15[%c0_41, %c0_42], %76 {strides = array<i32>} : memref<80x32xf32, #tpu.memory_space<vmem>>, vector<80x32xf32>,
    return
  }
  func.func @transform_0(%arg0: i32) -> (i32, i32) {
    %c0_i32 = arith.constant 0 : i32
    %c0_i32_0 = arith.constant 0 : i32
    return %arg0, %c0_i32 : i32, i32
  }
  func.func @transform_1(%arg0: i32) -> (i32, i32) {
    %c0_i32 = arith.constant 0 : i32
    %c0_i32_0 = arith.constant 0 : i32
    return %arg0, %c0_i32 : i32, i32
  }
  func.func @transform_2(%arg0: i32) -> (i32, i32) {
    %c0_i32 = arith.constant 0 : i32
    %c0_i32_0 = arith.constant 0 : i32
    return %arg0, %c0_i32 : i32, i32
  }
  func.func @transform_3(%arg0: i32) -> (i32, i32) {
    %c0_i32 = arith.constant 0 : i32
    %c0_i32_0 = arith.constant 0 : i32
    %c0_i32_1 = arith.constant 0 : i32
    return %c0_i32, %c0_i32_0 : i32, i32
  }
  func.func @transform_4(%arg0: i32) -> (i32, i32) {
    %c0_i32 = arith.constant 0 : i32
    %c0_i32_0 = arith.constant 0 : i32
    %c0_i32_1 = arith.constant 0 : i32
    return %c0_i32, %c0_i32_0 : i32, i32
  }
  func.func @transform_5(%arg0: i32) -> (i32, i32) {
    %c0_i32 = arith.constant 0 : i32
    %c0_i32_0 = arith.constant 0 : i32
    %c0_i32_1 = arith.constant 0 : i32
    return %c0_i32, %c0_i32_0 : i32, i32
  }
  func.func @transform_6(%arg0: i32) -> (i32, i32) {
    %c0_i32 = arith.constant 0 : i32
    %c0_i32_0 = arith.constant 0 : i32
    %c0_i32_1 = arith.constant 0 : i32
    return %c0_i32, %c0_i32_0 : i32, i32
  }
  func.func @transform_7(%arg0: i32) -> (i32, i32) {
    %c0_i32 = arith.constant 0 : i32
    %c0_i32_0 = arith.constant 0 : i32
    %c0_i32_1 = arith.constant 0 : i32
    return %c0_i32, %c0_i32_0 : i32, i32
  }
  func.func @transform_8(%arg0: i32) -> (i32, i32) {
    %c0_i32 = arith.constant 0 : i32
    %c0_i32_0 = arith.constant 0 : i32
    %c0_i32_1 = arith.constant 0 : i32
    return %c0_i32, %c0_i32_0 : i32, i32
  }
  func.func @transform_9(%arg0: i32) -> (i32, i32) {
    %c0_i32 = arith.constant 0 : i32
    %c0_i32_0 = arith.constant 0 : i32
    %c0_i32_1 = arith.constant 0 : i32
    return %c0_i32, %c0_i32_0 : i32, i32
  }
  func.func @transform_10(%arg0: i32) -> (i32, i32) {
    %c0_i32 = arith.constant 0 : i32
    %c0_i32_0 = arith.constant 0 : i32
    %c0_i32_1 = arith.constant 0 : i32
    return %c0_i32, %c0_i32_0 : i32, i32
  }
  func.func @transform_11(%arg0: i32) -> (i32, i32) {
    %c0_i32 = arith.constant 0 : i32
    %c0_i32_0 = arith.constant 0 : i32
    %c0_i32_1 = arith.constant 0 : i32
    return %c0_i32, %c0_i32_0 : i32, i32
  }
  func.func @transform_12(%arg0: i32) -> (i32, i32) {
    %c0_i32 = arith.constant 0 : i32
    %c0_i32_0 = arith.constant 0 : i32
    %c0_i32_1 = arith.constant 0 : i32
    return %c0_i32, %c0_i32_0 : i32, i32
  }
  func.func @transform_13(%arg0: i32) -> (i32, i32) {
    %c0_i32 = arith.constant 0 : i32
    %c0_i32_0 = arith.constant 0 : i32
    %c0_i32_1 = arith.constant 0 : i32
    return %c0_i32, %c0_i32_0 : i32, i32
  }
  func.func @transform_14(%arg0: i32) -> (i32, i32) {
    %c0_i32 = arith.constant 0 : i32
    %c0_i32_0 = arith.constant 0 : i32
    return %arg0, %c0_i32 : i32, i32
  }
}

</mosaic_0001>

<llo_original>
// kernel: mul.355
$region0: #{mul.355}
  #allocation0 [shape = 's32[1]{0}', space=sflag, size = 0x4, scoped, tag = 'scoped memory for mul.355']
  %s0 = inlined_call_operand.vmem [shape: f32[40,3], index: 0, kind: input, shape index: {}]
  %s1 = inlined_call_operand.vmem [shape: f32[2,40,2,3], index: 1, kind: output, shape index: {}]
  // Predicated region
  $region2: #{mul.355} parent=0 // pred_check
    _
  $region3: #{mul.355} parent=0 // pred_check_branch
    %3 = sbr.rel (0) target = $region5
  $region4: #{mul.355} parent=0 // pred_region
    _
  $region5: #{mul.355} parent=0 // pred_fallthru
    _
  %v4 = vld [vmem:[%s0] ss:$0 sm:$0xff]
  %5 = vst [vmem:[%s1] sm:$0x3] %v4
  %s6 = scalar_lea.vmem %s1, 6
  %7 = vst [vmem:[%s6] sm:$0x3] %v4
  %s8 = scalar_lea.vmem %s0, 1
  %v9 = vld [vmem:[%s8] ss:$0 sm:$0xff]
  %s10 = scalar_lea.vmem %s1, 2
  %11 = vst [vmem:[%s10] sm:$0x3] %v9
  %s12 = scalar_lea.vmem %s1, 8
  %13 = vst [vmem:[%s12] sm:$0x3] %v9
  %s14 = scalar_lea.vmem %s0, 2
  %v15 = vld [vmem:[%s14] ss:$0 sm:$0xff]
  %s16 = scalar_lea.vmem %s1, 4
  %17 = vst [vmem:[%s16] sm:$0x3] %v15
  %s18 = scalar_lea.vmem %s1, 10
  %19 = vst [vmem:[%s18] sm:$0x3] %v15

// kernel: encoder_forward.4
$region0: #{encoder_forward.4}
  #allocation0 [shape = 'u32[]', space=smem, size = 0x4, offset = 0x4, fixed_abs, tag = 'smem constant byte address 0x4 - core index']
  #allocation1 [shape = 'u32[72,128]{1,0:T(1,128)}', space=vmem, size = 0x9000, scoped, tag = 'internal scratch']
  %s0 = inlined_call_operand.vmem [shape: bf16[80,32], index: 0, kind: input, shape index: {}]
  %s1 = inlined_call_operand.vmem [shape: bf16[80,32], index: 1, kind: input, shape index: {}]
  %s2 = inlined_call_operand.vmem [shape: f32[80,48], index: 2, kind: input, shape index: {}]
  %s3 = inlined_call_operand.vmem [shape: bf16[32,32], index: 3, kind: input, shape index: {}]
  %s4 = inlined_call_operand.vmem [shape: f32[1,32], index: 4, kind: input, shape index: {}]
  %s5 = inlined_call_operand.vmem [shape: bf16[32,64], index: 5, kind: input, shape index: {}]
  %s6 = inlined_call_operand.vmem [shape: f32[1,64], index: 6, kind: input, shape index: {}]
  %s7 = inlined_call_operand.vmem [shape: f32[1,48], index: 7, kind: input, shape index: {}]
  %s8 = inlined_call_operand.vmem [shape: bf16[16,16], index: 8, kind: input, shape index: {}]
  %s9 = inlined_call_operand.vmem [shape: f32[80,128], index: 9, kind: output, shape index: {}]
  %s10 = sld [smem:[#allocation0]]
  $region46: #{encoder_forward.4} parent=0
    _
  %s12 = ssub.s32 1, %s10
  %s13 = scalar_select 0, %s12, %s10
  // Predicated region
  $region2: #{encoder_forward.4} parent=0 // pred_check
    _
  $region3: #{encoder_forward.4} parent=0 // pred_check_branch
    %15 = sbr.rel (0) target = $region5
  $region4: #{encoder_forward.4} parent=0 // pred_region
    _
  $region5: #{encoder_forward.4} parent=0 // pred_fallthru
    _
  // Predicated region
  $region6: #{encoder_forward.4} parent=0 // pred_check
    _
  $region7: #{encoder_forward.4} parent=0 // pred_check_branch
    %17 = sbr.rel (0) target = $region9
  $region8: #{encoder_forward.4} parent=0 // pred_region
    _
  $region9: #{encoder_forward.4} parent=0 // pred_fallthru
    _
  // Predicated region
  $region10: #{encoder_forward.4} parent=0 // pred_check
    _
  $region11: #{encoder_forward.4} parent=0 // pred_check_branch
    %19 = sbr.rel (0) target = $region13
  $region12: #{encoder_forward.4} parent=0 // pred_region
    _
  $region13: #{encoder_forward.4} parent=0 // pred_fallthru
    _
  // Predicated region
  $region14: #{encoder_forward.4} parent=0 // pred_check
    _
  $region15: #{encoder_forward.4} parent=0 // pred_check_branch
    %21 = sbr.rel (0) target = $region17
  $region16: #{encoder_forward.4} parent=0 // pred_region
    _
  $region17: #{encoder_forward.4} parent=0 // pred_fallthru
    _
  // Predicated region
  $region18: #{encoder_forward.4} parent=0 // pred_check
    _
  $region19: #{encoder_forward.4} parent=0 // pred_check_branch
    %23 = sbr.rel (0) target = $region21
  $region20: #{encoder_forward.4} parent=0 // pred_region
    _
  $region21: #{encoder_forward.4} parent=0 // pred_fallthru
    _
  // Predicated region
  $region22: #{encoder_forward.4} parent=0 // pred_check
    _
  $region23: #{encoder_forward.4} parent=0 // pred_check_branch
    %25 = sbr.rel (0) target = $region25
  $region24: #{encoder_forward.4} parent=0 // pred_region
    _
  $region25: #{encoder_forward.4} parent=0 // pred_fallthru
    _
  // Predicated region
  $region26: #{encoder_forward.4} parent=0 // pred_check
    _
  $region27: #{encoder_forward.4} parent=0 // pred_check_branch
    %27 = sbr.rel (0) target = $region29
  $region28: #{encoder_forward.4} parent=0 // pred_region
    _
  $region29: #{encoder_forward.4} parent=0 // pred_fallthru
    _
  // Predicated region
  $region30: #{encoder_forward.4} parent=0 // pred_check
    _
  $region31: #{encoder_forward.4} parent=0 // pred_check_branch
    %29 = sbr.rel (0) target = $region33
  $region32: #{encoder_forward.4} parent=0 // pred_region
    _
  $region33: #{encoder_forward.4} parent=0 // pred_fallthru
    _
  // Predicated region
  $region34: #{encoder_forward.4} parent=0 // pred_check
    _
  $region35: #{encoder_forward.4} parent=0 // pred_check_branch
    %31 = sbr.rel (0) target = $region37
  $region36: #{encoder_forward.4} parent=0 // pred_region
    _
  $region37: #{encoder_forward.4} parent=0 // pred_fallthru
    _
  %v33 = vld [vmem:[%s0] sm:$0xf]
  %v34 = vld [vmem:[%s0 + $0x4] sm:$0xf]
  %v35 = vld [vmem:[%s0 + $0x8] sm:$0xf]
  %v36 = vld [vmem:[%s0 + $0xc] sm:$0xf]
  %v37 = vld [vmem:[%s0 + $0x10] sm:$0xf]
  %v38 = vld [vmem:[%s0 + $0x14] sm:$0xf]
  %v39 = vld [vmem:[%s0 + $0x18] sm:$0xf]
  %v40 = vld [vmem:[%s0 + $0x1c] sm:$0xf]
  %v41 = vld [vmem:[%s0 + $0x20] sm:$0xf]
  %v42 = vld [vmem:[%s0 + $0x24] sm:$0xf]
  %v43 = vld [vmem:[%s1] sm:$0xf]
  %v44 = vld [vmem:[%s1 + $0x4] sm:$0xf]
  %v45 = vld [vmem:[%s1 + $0x8] sm:$0xf]
  %v46 = vld [vmem:[%s1 + $0xc] sm:$0xf]
  %v47 = vld [vmem:[%s1 + $0x10] sm:$0xf]
  %v48 = vld [vmem:[%s1 + $0x14] sm:$0xf]
  %v49 = vld [vmem:[%s1 + $0x18] sm:$0xf]
  %v50 = vld [vmem:[%s1 + $0x1c] sm:$0xf]
  %v51 = vld [vmem:[%s1 + $0x20] sm:$0xf]
  %v52 = vld [vmem:[%s1 + $0x24] sm:$0xf]
  %v53 = vunpack.c.l.bf16 %v33
  %v54 = vunpack.c.l.bf16 %v34
  %v55 = vunpack.c.l.bf16 %v35
  %v56 = vunpack.c.l.bf16 %v36
  %v57 = vunpack.c.l.bf16 %v37
  %v58 = vunpack.c.l.bf16 %v38
  %v59 = vunpack.c.l.bf16 %v39
  %v60 = vunpack.c.l.bf16 %v40
  %v61 = vunpack.c.l.bf16 %v41
  %v62 = vunpack.c.l.bf16 %v42
  %v63 = vunpack.c.l.bf16 %v43
  %v64 = vunpack.c.l.bf16 %v44
  %v65 = vunpack.c.l.bf16 %v45
  %v66 = vunpack.c.l.bf16 %v46
  %v67 = vunpack.c.l.bf16 %v47
  %v68 = vunpack.c.l.bf16 %v48
  %v69 = vunpack.c.l.bf16 %v49
  %v70 = vunpack.c.l.bf16 %v50
  %v71 = vunpack.c.l.bf16 %v51
  %v72 = vunpack.c.l.bf16 %v52
  %v73 = vadd.f32 %v53, %v63
  %v74 = vadd.f32 %v54, %v64
  %v75 = vadd.f32 %v55, %v65
  %v76 = vadd.f32 %v56, %v66
  %v77 = vadd.f32 %v57, %v67
  %v78 = vadd.f32 %v58, %v68
  %v79 = vadd.f32 %v59, %v69
  %v80 = vadd.f32 %v60, %v70
  %v81 = vadd.f32 %v61, %v71
  %v82 = vadd.f32 %v62, %v72
  %v83 = vpack.c.bf16 %v74, %v73
  %v84 = vpack.c.bf16 %v76, %v75
  %v85 = vpack.c.bf16 %v78, %v77
  %v86 = vpack.c.bf16 %v80, %v79
  %v87 = vpack.c.bf16 %v82, %v81
  %v88 = vld [vmem:[%s3] sm:$0xf]
  %v89 = vld [vmem:[%s3 + $0x4] sm:$0xf]
  %v90 = vld [vmem:[%s3 + $0x8] sm:$0xf]
  %v91 = vld [vmem:[%s3 + $0xc] sm:$0xf]
  %v92 = vld [vmem:[%s4] sm:$0x1]
  %v94 = vperm.slane %v92, 0
  %v106 = vunpack.c.l.b16 %v33
  %v107 = vunpack.c.l.b16 %v34
  %v108 = vunpack.c.l.b16 %v35
  %v109 = vunpack.c.l.b16 %v36
  %v110 = vunpack.c.l.b16 %v37
  %v111 = vunpack.c.l.b16 %v38
  %v112 = vunpack.c.l.b16 %v39
  %v113 = vunpack.c.l.b16 %v40
  %v114 = vunpack.c.l.b16 %v41
  %v115 = vunpack.c.l.b16 %v42
  %v116 = vpack.c.b16 %v107, %v106
  %v117 = vpack.c.b16 %v109, %v108
  %v118 = vpack.c.b16 %v111, %v110
  %v119 = vpack.c.b16 %v113, %v112
  %v120 = vpack.c.b16 %v115, %v114
  %v125 = vunpack.c.l.b16 %v88
  %v126 = vunpack.c.l.b16 %v89
  %v127 = vunpack.c.l.b16 %v90
  %v128 = vunpack.c.l.b16 %v91
  %v129 = vpack.c.b16 %v126, %v125
  %v130 = vpack.c.b16 %v128, %v127
  %vm133 = vcmask 261120
  %v135 = vsel %vm133, %v116, 0
  %v138 = vsel %vm133, %v117, 0
  %v141 = vsel %vm133, %v118, 0
  %v144 = vsel %vm133, %v119, 0
  %v147 = vsel %vm133, %v120, 0
  %149 = vmatpush.bf16.msra.mxu0 0
  %150 = vmatpush.bf16.msra.mxu0 0
  %151 = vmatpush.bf16.msra.mxu0 0
  %152 = vmatpush.bf16.msra.mxu0 0
  %153 = vmatpush.bf16.msra.mxu0 0
  %154 = vmatpush.bf16.msra.mxu0 0
  %155 = vmatpush.bf16.msra.mxu0 %v130
  %156 = vmatpush.bf16.msra.mxu0 %v129
  %157 = vmatmul.bf16.gmra.mxu0 %v135
  %v158 = vpop.f32.mrf.mxu0
  %v159 = vadd.f32 %v94, %v158
  %v160 = vpop.f32.mrf.mxu0
  %v161 = vadd.f32 %v94, %v160
  %162 = vmatmul.bf16.gmra.mxu0 %v138
  %v163 = vpop.f32.mrf.mxu0
  %v164 = vadd.f32 %v94, %v163
  %v165 = vpop.f32.mrf.mxu0
  %v166 = vadd.f32 %v94, %v165
  %167 = vmatmul.bf16.gmra.mxu0 %v141
  %v168 = vpop.f32.mrf.mxu0
  %v169 = vadd.f32 %v94, %v168
  %v170 = vpop.f32.mrf.mxu0
  %v171 = vadd.f32 %v94, %v170
  %172 = vmatmul.bf16.gmra.mxu0 %v144
  %v173 = vpop.f32.mrf.mxu0
  %v174 = vadd.f32 %v94, %v173
  %v175 = vpop.f32.mrf.mxu0
  %v176 = vadd.f32 %v94, %v175
  %177 = vmatmul.bf16.gmra.mxu0 %v147
  %v178 = vpop.f32.mrf.mxu0
  %v179 = vadd.f32 %v94, %v178
  %v180 = vpop.f32.mrf.mxu0
  %v181 = vadd.f32 %v94, %v180
  %182 = vdwg.mxu0
  %v183 = vld [vmem:[%s5] sm:$0xf]
  %v184 = vld [vmem:[%s5 + $0x4] sm:$0xf]
  %v185 = vld [vmem:[%s5 + $0x8] sm:$0xf]
  %v186 = vld [vmem:[%s5 + $0xc] sm:$0xf]
  %v187 = vld [vmem:[%s6] sm:$0x1]
  %v189 = vperm.slane %v187, 0
  %v195 = vunpack.c.l.b16 %v183
  %v196 = vunpack.c.l.b16 %v184
  %v197 = vunpack.c.l.b16 %v185
  %v198 = vunpack.c.l.b16 %v186
  %v199 = vpack.c.b16 %v196, %v195
  %v200 = vpack.c.b16 %v198, %v197
  %v204 = vsel %vm133, %v83, 0
  %v207 = vsel %vm133, %v84, 0
  %v210 = vsel %vm133, %v85, 0
  %v213 = vsel %vm133, %v86, 0
  %v216 = vsel %vm133, %v87, 0
  %218 = vmatpush.bf16.msra.mxu0 0
  %219 = vmatpush.bf16.msra.mxu0 0
  %220 = vmatpush.bf16.msra.mxu0 0
  %221 = vmatpush.bf16.msra.mxu0 0
  %222 = vmatpush.bf16.msra.mxu0 0
  %223 = vmatpush.bf16.msra.mxu0 0
  %224 = vmatpush.bf16.msra.mxu0 %v200
  %225 = vmatpush.bf16.msra.mxu0 %v199
  %226 = vmatmul.bf16.gmra.mxu0 %v204
  %v227 = vpop.f32.mrf.mxu0
  %v228 = vadd.f32 %v189, %v227
  %v229 = vpop.f32.mrf.mxu0
  %v230 = vadd.f32 %v189, %v229
  %231 = vmatmul.bf16.gmra.mxu0 %v207
  %v232 = vpop.f32.mrf.mxu0
  %v233 = vadd.f32 %v189, %v232
  %v234 = vpop.f32.mrf.mxu0
  %v235 = vadd.f32 %v189, %v234
  %236 = vmatmul.bf16.gmra.mxu0 %v210
  %v237 = vpop.f32.mrf.mxu0
  %v238 = vadd.f32 %v189, %v237
  %v239 = vpop.f32.mrf.mxu0
  %v240 = vadd.f32 %v189, %v239
  %241 = vmatmul.bf16.gmra.mxu0 %v213
  %v242 = vpop.f32.mrf.mxu0
  %v243 = vadd.f32 %v189, %v242
  %v244 = vpop.f32.mrf.mxu0
  %v245 = vadd.f32 %v189, %v244
  %246 = vmatmul.bf16.gmra.mxu0 %v216
  %v247 = vpop.f32.mrf.mxu0
  %v248 = vadd.f32 %v189, %v247
  %v249 = vpop.f32.mrf.mxu0
  %v250 = vadd.f32 %v189, %v249
  %251 = vdwg.mxu0
  %v252 = vld [vmem:[%s7] sm:$0x1]
  %v254 = vperm.slane %v252, 0
  %v256 = vmul.f32 %v228, %v254
  %v257 = vmul.f32 %v230, %v254
  %v258 = vmul.f32 %v233, %v254
  %v259 = vmul.f32 %v235, %v254
  %v260 = vmul.f32 %v238, %v254
  %v261 = vmul.f32 %v240, %v254
  %v262 = vmul.f32 %v243, %v254
  %v263 = vmul.f32 %v245, %v254
  %v264 = vmul.f32 %v248, %v254
  %v265 = vmul.f32 %v250, %v254
  %v266 = vld [vmem:[%s2] sm:$0xff]
  %v267 = vld [vmem:[%s2 + $0x8] sm:$0xff]
  %v268 = vld [vmem:[%s2 + $0x10] sm:$0xff]
  %v269 = vld [vmem:[%s2 + $0x18] sm:$0xff]
  %v270 = vld [vmem:[%s2 + $0x20] sm:$0xff]
  %v271 = vld [vmem:[%s2 + $0x28] sm:$0xff]
  %v272 = vld [vmem:[%s2 + $0x30] sm:$0xff]
  %v273 = vld [vmem:[%s2 + $0x38] sm:$0xff]
  %v274 = vld [vmem:[%s2 + $0x40] sm:$0xff]
  %v275 = vld [vmem:[%s2 + $0x48] sm:$0xff]
  %v276 = vadd.f32 %v256, %v266
  %v277 = vadd.f32 %v257, %v267
  %v278 = vadd.f32 %v258, %v268
  %v279 = vadd.f32 %v259, %v269
  %v280 = vadd.f32 %v260, %v270
  %v281 = vadd.f32 %v261, %v271
  %v282 = vadd.f32 %v262, %v272
  %v283 = vadd.f32 %v263, %v273
  %v284 = vadd.f32 %v264, %v274
  %v285 = vadd.f32 %v265, %v275
  %vm286 = vcmask 523648
  %v287 = vsel %vm286, %v228, -inf
  %288 = vmax.xlane.f32.xlu0 %v287
  %v289 = vpop.xlane.xlu0 %288
  %v290 = vsel %vm286, %v230, -inf
  %291 = vmax.xlane.f32.xlu0 %v290
  %v292 = vpop.xlane.xlu0 %291
  %v293 = vsel %vm286, %v233, -inf
  %294 = vmax.xlane.f32.xlu0 %v293
  %v295 = vpop.xlane.xlu0 %294
  %v296 = vsel %vm286, %v235, -inf
  %297 = vmax.xlane.f32.xlu0 %v296
  %v298 = vpop.xlane.xlu0 %297
  %v299 = vsel %vm286, %v238, -inf
  %300 = vmax.xlane.f32.xlu0 %v299
  %v301 = vpop.xlane.xlu0 %300
  %v302 = vsel %vm286, %v240, -inf
  %303 = vmax.xlane.f32.xlu0 %v302
  %v304 = vpop.xlane.xlu0 %303
  %v305 = vsel %vm286, %v243, -inf
  %306 = vmax.xlane.f32.xlu0 %v305
  %v307 = vpop.xlane.xlu0 %306
  %v308 = vsel %vm286, %v245, -inf
  %309 = vmax.xlane.f32.xlu0 %v308
  %v310 = vpop.xlane.xlu0 %309
  %v311 = vsel %vm286, %v248, -inf
  %312 = vmax.xlane.f32.xlu0 %v311
  %v313 = vpop.xlane.xlu0 %312
  %v314 = vsel %vm286, %v250, -inf
  %315 = vmax.xlane.f32.xlu0 %v314
  %v316 = vpop.xlane.xlu0 %315
  %v317 = vsub.f32 %v228, %v289
  %v318 = vsub.f32 %v230, %v292
  %v319 = vsub.f32 %v233, %v295
  %v320 = vsub.f32 %v235, %v298
  %v321 = vsub.f32 %v238, %v301
  %v322 = vsub.f32 %v240, %v304
  %v323 = vsub.f32 %v243, %v307
  %v324 = vsub.f32 %v245, %v310
  %v325 = vsub.f32 %v248, %v313
  %v326 = vsub.f32 %v250, %v316
  %v327 = vmul.f32 %v317, 1.442695
  %v328 = vpow.pop %v327
  %v329 = vmul.f32 %v318, 1.442695
  %v330 = vpow.pop %v329
  %v331 = vmul.f32 %v319, 1.442695
  %v332 = vpow.pop %v331
  %v333 = vmul.f32 %v320, 1.442695
  %v334 = vpow.pop %v333
  %v335 = vmul.f32 %v321, 1.442695
  %v336 = vpow.pop %v335
  %v337 = vmul.f32 %v322, 1.442695
  %v338 = vpow.pop %v337
  %v339 = vmul.f32 %v323, 1.442695
  %v340 = vpow.pop %v339
  %v341 = vmul.f32 %v324, 1.442695
  %v342 = vpow.pop %v341
  %v343 = vmul.f32 %v325, 1.442695
  %v344 = vpow.pop %v343
  %v345 = vmul.f32 %v326, 1.442695
  %v346 = vpow.pop %v345
  %v347 = vpack.c.bf16 %v330, %v328
  %v348 = vpack.c.bf16 %v334, %v332
  %v349 = vpack.c.bf16 %v338, %v336
  %v350 = vpack.c.bf16 %v342, %v340
  %v351 = vpack.c.bf16 %v346, %v344
  %v352 = vld [vmem:[%s8] sm:$0xf]
  %v353 = vld [vmem:[%s8 + $0x4] sm:$0xf]
  %359 = vrot.lane.b32.xlu0 %v347, 80
  %v360 = vpop.permute.xlu0 %359
  %361 = vrot.lane.b32.xlu0 %v348, 80
  %v362 = vpop.permute.xlu0 %361
  %363 = vrot.lane.b32.xlu0 %v349, 80
  %v364 = vpop.permute.xlu0 %363
  %365 = vrot.lane.b32.xlu0 %v350, 80
  %v366 = vpop.permute.xlu0 %365
  %367 = vrot.lane.b32.xlu0 %v351, 80
  %v368 = vpop.permute.xlu0 %367
  %v371 = vunpack.c.l.b16 %v352
  %v372 = vunpack.c.l.b16 %v353
  %v373 = vpack.c.b16 %v372, %v371
  %vm375 = vcmask 130048
  %v377 = vsel %vm375, %v360, 0
  %v380 = vsel %vm375, %v362, 0
  %v383 = vsel %vm375, %v364, 0
  %v386 = vsel %vm375, %v366, 0
  %v389 = vsel %vm375, %v368, 0
  %391 = vmatpush.bf16.msra.mxu0 0
  %392 = vmatpush.bf16.msra.mxu0 0
  %393 = vmatpush.bf16.msra.mxu0 0
  %394 = vmatpush.bf16.msra.mxu0 0
  %395 = vmatpush.bf16.msra.mxu0 0
  %396 = vmatpush.bf16.msra.mxu0 0
  %397 = vmatpush.bf16.msra.mxu0 0
  %398 = vmatpush.bf16.msra.mxu0 %v373
  %399 = vmatmul.bf16.gmra.mxu0 %v377
  %v400 = vpop.f32.mrf.mxu0
  %v401 = vadd.f32 0.0, %v400
  %v402 = vpop.f32.mrf.mxu0
  %v403 = vadd.f32 0.0, %v402
  %404 = vmatmul.bf16.gmra.mxu0 %v380
  %v405 = vpop.f32.mrf.mxu0
  %v406 = vadd.f32 0.0, %v405
  %v407 = vpop.f32.mrf.mxu0
  %v408 = vadd.f32 0.0, %v407
  %409 = vmatmul.bf16.gmra.mxu0 %v383
  %v410 = vpop.f32.mrf.mxu0
  %v411 = vadd.f32 0.0, %v410
  %v412 = vpop.f32.mrf.mxu0
  %v413 = vadd.f32 0.0, %v412
  %414 = vmatmul.bf16.gmra.mxu0 %v386
  %v415 = vpop.f32.mrf.mxu0
  %v416 = vadd.f32 0.0, %v415
  %v417 = vpop.f32.mrf.mxu0
  %v418 = vadd.f32 0.0, %v417
  %419 = vmatmul.bf16.gmra.mxu0 %v389
  %v420 = vpop.f32.mrf.mxu0
  %v421 = vadd.f32 0.0, %v420
  %v422 = vpop.f32.mrf.mxu0
  %v423 = vadd.f32 0.0, %v422
  %424 = vdwg.mxu0
  %v425 = vmax.f32 %v401, 1e-20
  %v426 = vmax.f32 %v403, 1e-20
  %v427 = vmax.f32 %v406, 1e-20
  %v428 = vmax.f32 %v408, 1e-20
  %v429 = vmax.f32 %v411, 1e-20
  %v430 = vmax.f32 %v413, 1e-20
  %v431 = vmax.f32 %v416, 1e-20
  %v432 = vmax.f32 %v418, 1e-20
  %v433 = vmax.f32 %v421, 1e-20
  %v434 = vmax.f32 %v423, 1e-20
  %v435 = vrcp.pop %v425
  %v436 = vrcp.pop %v426
  %v437 = vrcp.pop %v427
  %v438 = vrcp.pop %v428
  %v439 = vrcp.pop %v429
  %v440 = vrcp.pop %v430
  %v441 = vrcp.pop %v431
  %v442 = vrcp.pop %v432
  %v443 = vrcp.pop %v433
  %v444 = vrcp.pop %v434
  %455 = vrot.lane.b32.xlu0 %v435, 48
  %v456 = vpop.permute.xlu0 %455
  %457 = vrot.lane.b32.xlu0 %v436, 48
  %v458 = vpop.permute.xlu0 %457
  %459 = vrot.lane.b32.xlu0 %v437, 48
  %v460 = vpop.permute.xlu0 %459
  %461 = vrot.lane.b32.xlu0 %v438, 48
  %v462 = vpop.permute.xlu0 %461
  %463 = vrot.lane.b32.xlu0 %v439, 48
  %v464 = vpop.permute.xlu0 %463
  %465 = vrot.lane.b32.xlu0 %v440, 48
  %v466 = vpop.permute.xlu0 %465
  %467 = vrot.lane.b32.xlu0 %v441, 48
  %v468 = vpop.permute.xlu0 %467
  %469 = vrot.lane.b32.xlu0 %v442, 48
  %v470 = vpop.permute.xlu0 %469
  %471 = vrot.lane.b32.xlu0 %v443, 48
  %v472 = vpop.permute.xlu0 %471
  %473 = vrot.lane.b32.xlu0 %v444, 48
  %v474 = vpop.permute.xlu0 %473
  %v485 = vmul.f32 %v328, %v456
  %v486 = vmul.f32 %v330, %v458
  %v487 = vmul.f32 %v332, %v460
  %v488 = vmul.f32 %v334, %v462
  %v489 = vmul.f32 %v336, %v464
  %v490 = vmul.f32 %v338, %v466
  %v491 = vmul.f32 %v340, %v468
  %v492 = vmul.f32 %v342, %v470
  %v493 = vmul.f32 %v344, %v472
  %v494 = vmul.f32 %v346, %v474
  %495 = vst.msk [vmem:[%s9] sm:$0xff] %vm133, %v159
  %496 = vst.msk [vmem:[%s9 + $0x8] sm:$0xff] %vm133, %v161
  %497 = vst.msk [vmem:[%s9 + $0x10] sm:$0xff] %vm133, %v164
  %498 = vst.msk [vmem:[%s9 + $0x18] sm:$0xff] %vm133, %v166
  %499 = vst.msk [vmem:[%s9 + $0x20] sm:$0xff] %vm133, %v169
  %500 = vst.msk [vmem:[%s9 + $0x28] sm:$0xff] %vm133, %v171
  %501 = vst.msk [vmem:[%s9 + $0x30] sm:$0xff] %vm133, %v174
  %502 = vst.msk [vmem:[%s9 + $0x38] sm:$0xff] %vm133, %v176
  %503 = vst.msk [vmem:[%s9 + $0x40] sm:$0xff] %vm133, %v179
  %504 = vst.msk [vmem:[%s9 + $0x48] sm:$0xff] %vm133, %v181
  %515 = vrot.lane.b32.xlu0 %v276, 32
  %v516 = vpop.permute.xlu0 %515
  %517 = vrot.lane.b32.xlu0 %v277, 32
  %v518 = vpop.permute.xlu0 %517
  %519 = vrot.lane.b32.xlu0 %v278, 32
  %v520 = vpop.permute.xlu0 %519
  %521 = vrot.lane.b32.xlu0 %v279, 32
  %v522 = vpop.permute.xlu0 %521
  %523 = vrot.lane.b32.xlu0 %v280, 32
  %v524 = vpop.permute.xlu0 %523
  %525 = vrot.lane.b32.xlu0 %v281, 32
  %v526 = vpop.permute.xlu0 %525
  %527 = vrot.lane.b32.xlu0 %v282, 32
  %v528 = vpop.permute.xlu0 %527
  %529 = vrot.lane.b32.xlu0 %v283, 32
  %v530 = vpop.permute.xlu0 %529
  %531 = vrot.lane.b32.xlu0 %v284, 32
  %v532 = vpop.permute.xlu0 %531
  %533 = vrot.lane.b32.xlu0 %v285, 32
  %v534 = vpop.permute.xlu0 %533
  %vm545 = vcmask 654592
  %546 = vst.msk [vmem:[%s9] sm:$0xff] %vm545, %v516
  %547 = vst.msk [vmem:[%s9 + $0x8] sm:$0xff] %vm545, %v518
  %548 = vst.msk [vmem:[%s9 + $0x10] sm:$0xff] %vm545, %v520
  %549 = vst.msk [vmem:[%s9 + $0x18] sm:$0xff] %vm545, %v522
  %550 = vst.msk [vmem:[%s9 + $0x20] sm:$0xff] %vm545, %v524
  %551 = vst.msk [vmem:[%s9 + $0x28] sm:$0xff] %vm545, %v526
  %552 = vst.msk [vmem:[%s9 + $0x30] sm:$0xff] %vm545, %v528
  %553 = vst.msk [vmem:[%s9 + $0x38] sm:$0xff] %vm545, %v530
  %554 = vst.msk [vmem:[%s9 + $0x40] sm:$0xff] %vm545, %v532
  %555 = vst.msk [vmem:[%s9 + $0x48] sm:$0xff] %vm545, %v534
  %566 = vrot.lane.b32.xlu0 %v485, 32
  %v567 = vpop.permute.xlu0 %566
  %568 = vrot.lane.b32.xlu0 %v486, 32
  %v569 = vpop.permute.xlu0 %568
  %570 = vrot.lane.b32.xlu0 %v487, 32
  %v571 = vpop.permute.xlu0 %570
  %572 = vrot.lane.b32.xlu0 %v488, 32
  %v573 = vpop.permute.xlu0 %572
  %574 = vrot.lane.b32.xlu0 %v489, 32
  %v575 = vpop.permute.xlu0 %574
  %576 = vrot.lane.b32.xlu0 %v490, 32
  %v577 = vpop.permute.xlu0 %576
  %578 = vrot.lane.b32.xlu0 %v491, 32
  %v579 = vpop.permute.xlu0 %578
  %580 = vrot.lane.b32.xlu0 %v492, 32
  %v581 = vpop.permute.xlu0 %580
  %582 = vrot.lane.b32.xlu0 %v493, 32
  %v583 = vpop.permute.xlu0 %582
  %584 = vrot.lane.b32.xlu0 %v494, 32
  %v585 = vpop.permute.xlu0 %584
  %vm596 = vcmask 786048
  %597 = vst.msk [vmem:[%s9] sm:$0xff] %vm596, %v567
  %598 = vst.msk [vmem:[%s9 + $0x8] sm:$0xff] %vm596, %v569
  %599 = vst.msk [vmem:[%s9 + $0x10] sm:$0xff] %vm596, %v571
  %600 = vst.msk [vmem:[%s9 + $0x18] sm:$0xff] %vm596, %v573
  %601 = vst.msk [vmem:[%s9 + $0x20] sm:$0xff] %vm596, %v575
  %602 = vst.msk [vmem:[%s9 + $0x28] sm:$0xff] %vm596, %v577
  %603 = vst.msk [vmem:[%s9 + $0x30] sm:$0xff] %vm596, %v579
  %604 = vst.msk [vmem:[%s9 + $0x38] sm:$0xff] %vm596, %v581
  %605 = vst.msk [vmem:[%s9 + $0x40] sm:$0xff] %vm596, %v583
  %606 = vst.msk [vmem:[%s9 + $0x48] sm:$0xff] %vm596, %v585
  %vm607 = vcmask 1048320
  %608 = vst.msk [vmem:[%s9] sm:$0xff] %vm607, 0.0
  %609 = vst.msk [vmem:[%s9 + $0x8] sm:$0xff] %vm607, 0.0
  %610 = vst.msk [vmem:[%s9 + $0x10] sm:$0xff] %vm607, 0.0
  %611 = vst.msk [vmem:[%s9 + $0x18] sm:$0xff] %vm607, 0.0
  %612 = vst.msk [vmem:[%s9 + $0x20] sm:$0xff] %vm607, 0.0
  %613 = vst.msk [vmem:[%s9 + $0x28] sm:$0xff] %vm607, 0.0
  %614 = vst.msk [vmem:[%s9 + $0x30] sm:$0xff] %vm607, 0.0
  %615 = vst.msk [vmem:[%s9 + $0x38] sm:$0xff] %vm607, 0.0
  %616 = vst.msk [vmem:[%s9 + $0x40] sm:$0xff] %vm607, 0.0
  %617 = vst.msk [vmem:[%s9 + $0x48] sm:$0xff] %vm607, 0.0
  // Predicated region
  $region38: #{encoder_forward.4} parent=0 // pred_check
    _
  $region39: #{encoder_forward.4} parent=0 // pred_check_branch
    %619 = sbr.rel (0) target = $region41
  $region40: #{encoder_forward.4} parent=0 // pred_region
    _
  $region41: #{encoder_forward.4} parent=0 // pred_fallthru
    _
  // Predicated region
  $region42: #{encoder_forward.4} parent=0 // pred_check
    _
  $region43: #{encoder_forward.4} parent=0 // pred_check_branch
    %621 = sbr.rel (0) target = $region45
  $region44: #{encoder_forward.4} parent=0 // pred_region
    _
  $region45: #{encoder_forward.4} parent=0 // pred_fallthru
    _

// kernel: encoder_forward.5
$region0: #{encoder_forward.5}
  #allocation0 [shape = 'u32[]', space=smem, size = 0x4, offset = 0x4, fixed_abs, tag = 'smem constant byte address 0x4 - core index']
  #allocation1 [shape = 'u32[72,128]{1,0:T(1,128)}', space=vmem, size = 0x9000, scoped, tag = 'internal scratch']
  %s0 = inlined_call_operand.vmem [shape: bf16[80,128], index: 0, kind: input, shape index: {}]
  %s1 = inlined_call_operand.vmem [shape: bf16[80,16], index: 1, kind: input, shape index: {}]
  %s2 = inlined_call_operand.vmem [shape: f32[80,32], index: 2, kind: input, shape index: {}]
  %s3 = inlined_call_operand.vmem [shape: bf16[16,128], index: 3, kind: input, shape index: {}]
  %s4 = inlined_call_operand.vmem [shape: bf16[128,32], index: 4, kind: input, shape index: {}]
  %s5 = inlined_call_operand.vmem [shape: f32[1,32], index: 5, kind: input, shape index: {}]
  %s6 = inlined_call_operand.vmem [shape: f32[1,32], index: 6, kind: input, shape index: {}]
  %s7 = inlined_call_operand.vmem [shape: f32[1,32], index: 7, kind: input, shape index: {}]
  %s8 = inlined_call_operand.vmem [shape: bf16[32,64], index: 8, kind: input, shape index: {}]
  %s9 = inlined_call_operand.vmem [shape: f32[1,64], index: 9, kind: input, shape index: {}]
  %s10 = inlined_call_operand.vmem [shape: bf16[64,32], index: 10, kind: input, shape index: {}]
  %s11 = inlined_call_operand.vmem [shape: f32[1,32], index: 11, kind: input, shape index: {}]
  %s12 = inlined_call_operand.vmem [shape: f32[1,32], index: 12, kind: input, shape index: {}]
  %s13 = inlined_call_operand.vmem [shape: f32[1,32], index: 13, kind: input, shape index: {}]
  %s14 = inlined_call_operand.vmem [shape: f32[80,32], index: 14, kind: output, shape index: {}]
  %s15 = sld [smem:[#allocation0]]
  $region66: #{encoder_forward.5} parent=0
    _
  %s17 = ssub.s32 1, %s15
  %s18 = scalar_select 0, %s17, %s15
  // Predicated region
  $region2: #{encoder_forward.5} parent=0 // pred_check
    _
  $region3: #{encoder_forward.5} parent=0 // pred_check_branch
    %20 = sbr.rel (0) target = $region5
  $region4: #{encoder_forward.5} parent=0 // pred_region
    _
  $region5: #{encoder_forward.5} parent=0 // pred_fallthru
    _
  // Predicated region
  $region6: #{encoder_forward.5} parent=0 // pred_check
    _
  $region7: #{encoder_forward.5} parent=0 // pred_check_branch
    %22 = sbr.rel (0) target = $region9
  $region8: #{encoder_forward.5} parent=0 // pred_region
    _
  $region9: #{encoder_forward.5} parent=0 // pred_fallthru
    _
  // Predicated region
  $region10: #{encoder_forward.5} parent=0 // pred_check
    _
  $region11: #{encoder_forward.5} parent=0 // pred_check_branch
    %24 = sbr.rel (0) target = $region13
  $region12: #{encoder_forward.5} parent=0 // pred_region
    _
  $region13: #{encoder_forward.5} parent=0 // pred_fallthru
    _
  // Predicated region
  $region14: #{encoder_forward.5} parent=0 // pred_check
    _
  $region15: #{encoder_forward.5} parent=0 // pred_check_branch
    %26 = sbr.rel (0) target = $region17
  $region16: #{encoder_forward.5} parent=0 // pred_region
    _
  $region17: #{encoder_forward.5} parent=0 // pred_fallthru
    _
  // Predicated region
  $region18: #{encoder_forward.5} parent=0 // pred_check
    _
  $region19: #{encoder_forward.5} parent=0 // pred_check_branch
    %28 = sbr.rel (0) target = $region21
  $region20: #{encoder_forward.5} parent=0 // pred_region
    _
  $region21: #{encoder_forward.5} parent=0 // pred_fallthru
    _
  // Predicated region
  $region22: #{encoder_forward.5} parent=0 // pred_check
    _
  $region23: #{encoder_forward.5} parent=0 // pred_check_branch
    %30 = sbr.rel (0) target = $region25
  $region24: #{encoder_forward.5} parent=0 // pred_region
    _
  $region25: #{encoder_forward.5} parent=0 // pred_fallthru
    _
  // Predicated region
  $region26: #{encoder_forward.5} parent=0 // pred_check
    _
  $region27: #{encoder_forward.5} parent=0 // pred_check_branch
    %32 = sbr.rel (0) target = $region29
  $region28: #{encoder_forward.5} parent=0 // pred_region
    _
  $region29: #{encoder_forward.5} parent=0 // pred_fallthru
    _
  // Predicated region
  $region30: #{encoder_forward.5} parent=0 // pred_check
    _
  $region31: #{encoder_forward.5} parent=0 // pred_check_branch
    %34 = sbr.rel (0) target = $region33
  $region32: #{encoder_forward.5} parent=0 // pred_region
    _
  $region33: #{encoder_forward.5} parent=0 // pred_fallthru
    _
  // Predicated region
  $region34: #{encoder_forward.5} parent=0 // pred_check
    _
  $region35: #{encoder_forward.5} parent=0 // pred_check_branch
    %36 = sbr.rel (0) target = $region37
  $region36: #{encoder_forward.5} parent=0 // pred_region
    _
  $region37: #{encoder_forward.5} parent=0 // pred_fallthru
    _
  // Predicated region
  $region38: #{encoder_forward.5} parent=0 // pred_check
    _
  $region39: #{encoder_forward.5} parent=0 // pred_check_branch
    %38 = sbr.rel (0) target = $region41
  $region40: #{encoder_forward.5} parent=0 // pred_region
    _
  $region41: #{encoder_forward.5} parent=0 // pred_fallthru
    _
  // Predicated region
  $region42: #{encoder_forward.5} parent=0 // pred_check
    _
  $region43: #{encoder_forward.5} parent=0 // pred_check_branch
    %40 = sbr.rel (0) target = $region45
  $region44: #{encoder_forward.5} parent=0 // pred_region
    _
  $region45: #{encoder_forward.5} parent=0 // pred_fallthru
    _
  // Predicated region
  $region46: #{encoder_forward.5} parent=0 // pred_check
    _
  $region47: #{encoder_forward.5} parent=0 // pred_check_branch
    %42 = sbr.rel (0) target = $region49
  $region48: #{encoder_forward.5} parent=0 // pred_region
    _
  $region49: #{encoder_forward.5} parent=0 // pred_fallthru
    _
  // Predicated region
  $region50: #{encoder_forward.5} parent=0 // pred_check
    _
  $region51: #{encoder_forward.5} parent=0 // pred_check_branch
    %44 = sbr.rel (0) target = $region53
  $region52: #{encoder_forward.5} parent=0 // pred_region
    _
  $region53: #{encoder_forward.5} parent=0 // pred_fallthru
    _
  // Predicated region
  $region54: #{encoder_forward.5} parent=0 // pred_check
    _
  $region55: #{encoder_forward.5} parent=0 // pred_check_branch
    %46 = sbr.rel (0) target = $region57
  $region56: #{encoder_forward.5} parent=0 // pred_region
    _
  $region57: #{encoder_forward.5} parent=0 // pred_fallthru
    _
  %v48 = vld [vmem:[%s1] sm:$0xf]
  %v49 = vld [vmem:[%s1 + $0x4] sm:$0xf]
  %v50 = vld [vmem:[%s1 + $0x8] sm:$0xf]
  %v51 = vld [vmem:[%s1 + $0xc] sm:$0xf]
  %v52 = vld [vmem:[%s1 + $0x10] sm:$0xf]
  %v53 = vld [vmem:[%s1 + $0x14] sm:$0xf]
  %v54 = vld [vmem:[%s1 + $0x18] sm:$0xf]
  %v55 = vld [vmem:[%s1 + $0x1c] sm:$0xf]
  %v56 = vld [vmem:[%s1 + $0x20] sm:$0xf]
  %v57 = vld [vmem:[%s1 + $0x24] sm:$0xf]
  %v58 = vld [vmem:[%s3] sm:$0xf]
  %v59 = vld [vmem:[%s3 + $0x4] sm:$0xf]
  %v70 = vunpack.c.l.b16 %v48
  %v71 = vunpack.c.l.b16 %v49
  %v72 = vunpack.c.l.b16 %v50
  %v73 = vunpack.c.l.b16 %v51
  %v74 = vunpack.c.l.b16 %v52
  %v75 = vunpack.c.l.b16 %v53
  %v76 = vunpack.c.l.b16 %v54
  %v77 = vunpack.c.l.b16 %v55
  %v78 = vunpack.c.l.b16 %v56
  %v79 = vunpack.c.l.b16 %v57
  %v80 = vpack.c.b16 %v71, %v70
  %v81 = vpack.c.b16 %v73, %v72
  %v82 = vpack.c.b16 %v75, %v74
  %v83 = vpack.c.b16 %v77, %v76
  %v84 = vpack.c.b16 %v79, %v78
  %v87 = vunpack.c.l.b16 %v58
  %v88 = vunpack.c.l.b16 %v59
  %v89 = vpack.c.b16 %v88, %v87
  %vm91 = vcmask 130048
  %v93 = vsel %vm91, %v80, 0
  %v96 = vsel %vm91, %v81, 0
  %v99 = vsel %vm91, %v82, 0
  %v102 = vsel %vm91, %v83, 0
  %v105 = vsel %vm91, %v84, 0
  %107 = vmatpush.bf16.msra.mxu0 0
  %108 = vmatpush.bf16.msra.mxu0 0
  %109 = vmatpush.bf16.msra.mxu0 0
  %110 = vmatpush.bf16.msra.mxu0 0
  %111 = vmatpush.bf16.msra.mxu0 0
  %112 = vmatpush.bf16.msra.mxu0 0
  %113 = vmatpush.bf16.msra.mxu0 0
  %114 = vmatpush.bf16.msra.mxu0 %v89
  %115 = vmatmul.bf16.gmra.mxu0 %v93
  %v116 = vpop.f32.mrf.mxu0
  %v117 = vadd.f32 0.0, %v116
  %v118 = vpop.f32.mrf.mxu0
  %v119 = vadd.f32 0.0, %v118
  %120 = vmatmul.bf16.gmra.mxu0 %v96
  %v121 = vpop.f32.mrf.mxu0
  %v122 = vadd.f32 0.0, %v121
  %v123 = vpop.f32.mrf.mxu0
  %v124 = vadd.f32 0.0, %v123
  %125 = vmatmul.bf16.gmra.mxu0 %v99
  %v126 = vpop.f32.mrf.mxu0
  %v127 = vadd.f32 0.0, %v126
  %v128 = vpop.f32.mrf.mxu0
  %v129 = vadd.f32 0.0, %v128
  %130 = vmatmul.bf16.gmra.mxu0 %v102
  %v131 = vpop.f32.mrf.mxu0
  %v132 = vadd.f32 0.0, %v131
  %v133 = vpop.f32.mrf.mxu0
  %v134 = vadd.f32 0.0, %v133
  %135 = vmatmul.bf16.gmra.mxu0 %v105
  %v136 = vpop.f32.mrf.mxu0
  %v137 = vadd.f32 0.0, %v136
  %v138 = vpop.f32.mrf.mxu0
  %v139 = vadd.f32 0.0, %v138
  %140 = vdwg.mxu0
  %v141 = vld [vmem:[%s0] sm:$0xf]
  %v142 = vld [vmem:[%s0 + $0x4] sm:$0xf]
  %v143 = vld [vmem:[%s0 + $0x8] sm:$0xf]
  %v144 = vld [vmem:[%s0 + $0xc] sm:$0xf]
  %v145 = vld [vmem:[%s0 + $0x10] sm:$0xf]
  %v146 = vld [vmem:[%s0 + $0x14] sm:$0xf]
  %v147 = vld [vmem:[%s0 + $0x18] sm:$0xf]
  %v148 = vld [vmem:[%s0 + $0x1c] sm:$0xf]
  %v149 = vld [vmem:[%s0 + $0x20] sm:$0xf]
  %v150 = vld [vmem:[%s0 + $0x24] sm:$0xf]
  %v151 = vunpack.c.l.bf16 %v141
  %v152 = vunpack.c.l.bf16 %v142
  %v153 = vunpack.c.l.bf16 %v143
  %v154 = vunpack.c.l.bf16 %v144
  %v155 = vunpack.c.l.bf16 %v145
  %v156 = vunpack.c.l.bf16 %v146
  %v157 = vunpack.c.l.bf16 %v147
  %v158 = vunpack.c.l.bf16 %v148
  %v159 = vunpack.c.l.bf16 %v149
  %v160 = vunpack.c.l.bf16 %v150
  %v161 = vmul.f32 %v151, %v117
  %v162 = vmul.f32 %v152, %v119
  %v163 = vmul.f32 %v153, %v122
  %v164 = vmul.f32 %v154, %v124
  %v165 = vmul.f32 %v155, %v127
  %v166 = vmul.f32 %v156, %v129
  %v167 = vmul.f32 %v157, %v132
  %v168 = vmul.f32 %v158, %v134
  %v169 = vmul.f32 %v159, %v137
  %v170 = vmul.f32 %v160, %v139
  %v171 = vpack.c.bf16 %v162, %v161
  %v172 = vpack.c.bf16 %v164, %v163
  %v173 = vpack.c.bf16 %v166, %v165
  %v174 = vpack.c.bf16 %v168, %v167
  %v175 = vpack.c.bf16 %v170, %v169
  %v176 = vld [vmem:[%s4] sm:$0xf]
  %v177 = vld [vmem:[%s4 + $0x4] sm:$0xf]
  %v178 = vld [vmem:[%s4 + $0x8] sm:$0xf]
  %v179 = vld [vmem:[%s4 + $0xc] sm:$0xf]
  %v180 = vld [vmem:[%s4 + $0x10] sm:$0xf]
  %v181 = vld [vmem:[%s4 + $0x14] sm:$0xf]
  %v182 = vld [vmem:[%s4 + $0x18] sm:$0xf]
  %v183 = vld [vmem:[%s4 + $0x1c] sm:$0xf]
  %v184 = vld [vmem:[%s4 + $0x20] sm:$0xf]
  %v185 = vld [vmem:[%s4 + $0x24] sm:$0xf]
  %v186 = vld [vmem:[%s4 + $0x28] sm:$0xf]
  %v187 = vld [vmem:[%s4 + $0x2c] sm:$0xf]
  %v188 = vld [vmem:[%s4 + $0x30] sm:$0xf]
  %v189 = vld [vmem:[%s4 + $0x34] sm:$0xf]
  %v190 = vld [vmem:[%s4 + $0x38] sm:$0xf]
  %v191 = vld [vmem:[%s4 + $0x3c] sm:$0xf]
  %v192 = vld [vmem:[%s5] sm:$0x1]
  %v194 = vperm.slane %v192, 0
  %v212 = vunpack.c.l.b16 %v176
  %v213 = vunpack.c.l.b16 %v177
  %v214 = vunpack.c.l.b16 %v178
  %v215 = vunpack.c.l.b16 %v179
  %v216 = vunpack.c.l.b16 %v180
  %v217 = vunpack.c.l.b16 %v181
  %v218 = vunpack.c.l.b16 %v182
  %v219 = vunpack.c.l.b16 %v183
  %v220 = vunpack.c.l.b16 %v184
  %v221 = vunpack.c.l.b16 %v185
  %v222 = vunpack.c.l.b16 %v186
  %v223 = vunpack.c.l.b16 %v187
  %v224 = vunpack.c.l.b16 %v188
  %v225 = vunpack.c.l.b16 %v189
  %v226 = vunpack.c.l.b16 %v190
  %v227 = vunpack.c.l.b16 %v191
  %v228 = vpack.c.b16 %v213, %v212
  %v229 = vpack.c.b16 %v215, %v214
  %v230 = vpack.c.b16 %v217, %v216
  %v231 = vpack.c.b16 %v219, %v218
  %v232 = vpack.c.b16 %v221, %v220
  %v233 = vpack.c.b16 %v223, %v222
  %v234 = vpack.c.b16 %v225, %v224
  %v235 = vpack.c.b16 %v227, %v226
  %244 = vmatpush.bf16.msra.mxu0 %v235
  %245 = vmatpush.bf16.msra.mxu0 %v234
  %246 = vmatpush.bf16.msra.mxu0 %v233
  %247 = vmatpush.bf16.msra.mxu0 %v232
  %248 = vmatpush.bf16.msra.mxu0 %v231
  %249 = vmatpush.bf16.msra.mxu0 %v230
  %250 = vmatpush.bf16.msra.mxu0 %v229
  %251 = vmatpush.bf16.msra.mxu0 %v228
  %252 = vmatmul.bf16.gmra.mxu0 %v171
  %v253 = vpop.f32.mrf.mxu0
  %v254 = vadd.f32 %v194, %v253
  %v255 = vpop.f32.mrf.mxu0
  %v256 = vadd.f32 %v194, %v255
  %257 = vmatmul.bf16.gmra.mxu0 %v172
  %v258 = vpop.f32.mrf.mxu0
  %v259 = vadd.f32 %v194, %v258
  %v260 = vpop.f32.mrf.mxu0
  %v261 = vadd.f32 %v194, %v260
  %262 = vmatmul.bf16.gmra.mxu0 %v173
  %v263 = vpop.f32.mrf.mxu0
  %v264 = vadd.f32 %v194, %v263
  %v265 = vpop.f32.mrf.mxu0
  %v266 = vadd.f32 %v194, %v265
  %267 = vmatmul.bf16.gmra.mxu0 %v174
  %v268 = vpop.f32.mrf.mxu0
  %v269 = vadd.f32 %v194, %v268
  %v270 = vpop.f32.mrf.mxu0
  %v271 = vadd.f32 %v194, %v270
  %272 = vmatmul.bf16.gmra.mxu0 %v175
  %v273 = vpop.f32.mrf.mxu0
  %v274 = vadd.f32 %v194, %v273
  %v275 = vpop.f32.mrf.mxu0
  %v276 = vadd.f32 %v194, %v275
  %277 = vdwg.mxu0
  %v278 = vld [vmem:[%s2] sm:$0xff]
  %v279 = vld [vmem:[%s2 + $0x8] sm:$0xff]
  %v280 = vld [vmem:[%s2 + $0x10] sm:$0xff]
  %v281 = vld [vmem:[%s2 + $0x18] sm:$0xff]
  %v282 = vld [vmem:[%s2 + $0x20] sm:$0xff]
  %v283 = vld [vmem:[%s2 + $0x28] sm:$0xff]
  %v284 = vld [vmem:[%s2 + $0x30] sm:$0xff]
  %v285 = vld [vmem:[%s2 + $0x38] sm:$0xff]
  %v286 = vld [vmem:[%s2 + $0x40] sm:$0xff]
  %v287 = vld [vmem:[%s2 + $0x48] sm:$0xff]
  %v288 = vadd.f32 %v278, %v254
  %v289 = vadd.f32 %v279, %v256
  %v290 = vadd.f32 %v280, %v259
  %v291 = vadd.f32 %v281, %v261
  %v292 = vadd.f32 %v282, %v264
  %v293 = vadd.f32 %v283, %v266
  %v294 = vadd.f32 %v284, %v269
  %v295 = vadd.f32 %v285, %v271
  %v296 = vadd.f32 %v286, %v274
  %v297 = vadd.f32 %v287, %v276
  %v298 = vld [vmem:[%s6] sm:$0x1]
  %v299 = vld [vmem:[%s7] sm:$0x1]
  %vm300 = vcmask 261120
  %v301 = vsel %vm300, %v288, 0.0
  %302 = vadd.xlane.f32.xlu0 %v301
  %v303 = vpop.xlane.xlu0 %302
  %v304 = vsel %vm300, %v289, 0.0
  %305 = vadd.xlane.f32.xlu0 %v304
  %v306 = vpop.xlane.xlu0 %305
  %v307 = vsel %vm300, %v290, 0.0
  %308 = vadd.xlane.f32.xlu0 %v307
  %v309 = vpop.xlane.xlu0 %308
  %v310 = vsel %vm300, %v291, 0.0
  %311 = vadd.xlane.f32.xlu0 %v310
  %v312 = vpop.xlane.xlu0 %311
  %v313 = vsel %vm300, %v292, 0.0
  %314 = vadd.xlane.f32.xlu0 %v313
  %v315 = vpop.xlane.xlu0 %314
  %v316 = vsel %vm300, %v293, 0.0
  %317 = vadd.xlane.f32.xlu0 %v316
  %v318 = vpop.xlane.xlu0 %317
  %v319 = vsel %vm300, %v294, 0.0
  %320 = vadd.xlane.f32.xlu0 %v319
  %v321 = vpop.xlane.xlu0 %320
  %v322 = vsel %vm300, %v295, 0.0
  %323 = vadd.xlane.f32.xlu0 %v322
  %v324 = vpop.xlane.xlu0 %323
  %v325 = vsel %vm300, %v296, 0.0
  %326 = vadd.xlane.f32.xlu0 %v325
  %v327 = vpop.xlane.xlu0 %326
  %v328 = vsel %vm300, %v297, 0.0
  %329 = vadd.xlane.f32.xlu0 %v328
  %v330 = vpop.xlane.xlu0 %329
  %v331 = vrcp.pop 32.0
  %v332 = vmul.f32 32.0, %v331
  %v333 = vsub.f32 1.0, %v332
  %v334 = vmul.f32 %v331, %v333
  %v335 = vadd.f32 %v331, %v334
  %vm336 = vweird.f32 %v331
  %v337 = vsel %vm336, %v331, %v335
  %v338 = vmul.f32 %v303, %v337
  %v339 = vmul.f32 %v306, %v337
  %v340 = vmul.f32 %v309, %v337
  %v341 = vmul.f32 %v312, %v337
  %v342 = vmul.f32 %v315, %v337
  %v343 = vmul.f32 %v318, %v337
  %v344 = vmul.f32 %v321, %v337
  %v345 = vmul.f32 %v324, %v337
  %v346 = vmul.f32 %v327, %v337
  %v347 = vmul.f32 %v330, %v337
  %v348 = vsub.f32 %v288, %v338
  %v349 = vsub.f32 %v289, %v339
  %v350 = vsub.f32 %v290, %v340
  %v351 = vsub.f32 %v291, %v341
  %v352 = vsub.f32 %v292, %v342
  %v353 = vsub.f32 %v293, %v343
  %v354 = vsub.f32 %v294, %v344
  %v355 = vsub.f32 %v295, %v345
  %v356 = vsub.f32 %v296, %v346
  %v357 = vsub.f32 %v297, %v347
  %v358 = vmul.f32 %v348, %v348
  %v359 = vmul.f32 %v349, %v349
  %v360 = vmul.f32 %v350, %v350
  %v361 = vmul.f32 %v351, %v351
  %v362 = vmul.f32 %v352, %v352
  %v363 = vmul.f32 %v353, %v353
  %v364 = vmul.f32 %v354, %v354
  %v365 = vmul.f32 %v355, %v355
  %v366 = vmul.f32 %v356, %v356
  %v367 = vmul.f32 %v357, %v357
  %v368 = vsel %vm300, %v358, 0.0
  %369 = vadd.xlane.f32.xlu0 %v368
  %v370 = vpop.xlane.xlu0 %369
  %v371 = vsel %vm300, %v359, 0.0
  %372 = vadd.xlane.f32.xlu0 %v371
  %v373 = vpop.xlane.xlu0 %372
  %v374 = vsel %vm300, %v360, 0.0
  %375 = vadd.xlane.f32.xlu0 %v374
  %v376 = vpop.xlane.xlu0 %375
  %v377 = vsel %vm300, %v361, 0.0
  %378 = vadd.xlane.f32.xlu0 %v377
  %v379 = vpop.xlane.xlu0 %378
  %v380 = vsel %vm300, %v362, 0.0
  %381 = vadd.xlane.f32.xlu0 %v380
  %v382 = vpop.xlane.xlu0 %381
  %v383 = vsel %vm300, %v363, 0.0
  %384 = vadd.xlane.f32.xlu0 %v383
  %v385 = vpop.xlane.xlu0 %384
  %v386 = vsel %vm300, %v364, 0.0
  %387 = vadd.xlane.f32.xlu0 %v386
  %v388 = vpop.xlane.xlu0 %387
  %v389 = vsel %vm300, %v365, 0.0
  %390 = vadd.xlane.f32.xlu0 %v389
  %v391 = vpop.xlane.xlu0 %390
  %v392 = vsel %vm300, %v366, 0.0
  %393 = vadd.xlane.f32.xlu0 %v392
  %v394 = vpop.xlane.xlu0 %393
  %v395 = vsel %vm300, %v367, 0.0
  %396 = vadd.xlane.f32.xlu0 %v395
  %v397 = vpop.xlane.xlu0 %396
  %v398 = vmul.f32 %v370, %v337
  %v399 = vmul.f32 %v373, %v337
  %v400 = vmul.f32 %v376, %v337
  %v401 = vmul.f32 %v379, %v337
  %v402 = vmul.f32 %v382, %v337
  %v403 = vmul.f32 %v385, %v337
  %v404 = vmul.f32 %v388, %v337
  %v405 = vmul.f32 %v391, %v337
  %v406 = vmul.f32 %v394, %v337
  %v407 = vmul.f32 %v397, %v337
  %v408 = vadd.f32 %v398, 1e-05
  %v409 = vadd.f32 %v399, 1e-05
  %v410 = vadd.f32 %v400, 1e-05
  %v411 = vadd.f32 %v401, 1e-05
  %v412 = vadd.f32 %v402, 1e-05
  %v413 = vadd.f32 %v403, 1e-05
  %v414 = vadd.f32 %v404, 1e-05
  %v415 = vadd.f32 %v405, 1e-05
  %v416 = vadd.f32 %v406, 1e-05
  %v417 = vadd.f32 %v407, 1e-05
  %v418 = vrsqrt.pop %v408
  %v419 = vmul.f32 %v418, %v408
  %v420 = vmul.f32 %v419, %v418
  %v421 = vmul.f32 0.5, %v420
  %v422 = vsub.f32 1.5, %v421
  %v423 = vmul.f32 %v418, %v422
  %vm424 = vweird.f32 %v408
  %vm425 = vweird.f32 %v418
  %vm426 = vmor %vm424, %vm425
  %v427 = vsel %vm426, %v418, %v423
  %v428 = vrsqrt.pop %v409
  %v429 = vmul.f32 %v428, %v409
  %v430 = vmul.f32 %v429, %v428
  %v431 = vmul.f32 0.5, %v430
  %v432 = vsub.f32 1.5, %v431
  %v433 = vmul.f32 %v428, %v432
  %vm434 = vweird.f32 %v409
  %vm435 = vweird.f32 %v428
  %vm436 = vmor %vm434, %vm435
  %v437 = vsel %vm436, %v428, %v433
  %v438 = vrsqrt.pop %v410
  %v439 = vmul.f32 %v438, %v410
  %v440 = vmul.f32 %v439, %v438
  %v441 = vmul.f32 0.5, %v440
  %v442 = vsub.f32 1.5, %v441
  %v443 = vmul.f32 %v438, %v442
  %vm444 = vweird.f32 %v410
  %vm445 = vweird.f32 %v438
  %vm446 = vmor %vm444, %vm445
  %v447 = vsel %vm446, %v438, %v443
  %v448 = vrsqrt.pop %v411
  %v449 = vmul.f32 %v448, %v411
  %v450 = vmul.f32 %v449, %v448
  %v451 = vmul.f32 0.5, %v450
  %v452 = vsub.f32 1.5, %v451
  %v453 = vmul.f32 %v448, %v452
  %vm454 = vweird.f32 %v411
  %vm455 = vweird.f32 %v448
  %vm456 = vmor %vm454, %vm455
  %v457 = vsel %vm456, %v448, %v453
  %v458 = vrsqrt.pop %v412
  %v459 = vmul.f32 %v458, %v412
  %v460 = vmul.f32 %v459, %v458
  %v461 = vmul.f32 0.5, %v460
  %v462 = vsub.f32 1.5, %v461
  %v463 = vmul.f32 %v458, %v462
  %vm464 = vweird.f32 %v412
  %vm465 = vweird.f32 %v458
  %vm466 = vmor %vm464, %vm465
  %v467 = vsel %vm466, %v458, %v463
  %v468 = vrsqrt.pop %v413
  %v469 = vmul.f32 %v468, %v413
  %v470 = vmul.f32 %v469, %v468
  %v471 = vmul.f32 0.5, %v470
  %v472 = vsub.f32 1.5, %v471
  %v473 = vmul.f32 %v468, %v472
  %vm474 = vweird.f32 %v413
  %vm475 = vweird.f32 %v468
  %vm476 = vmor %vm474, %vm475
  %v477 = vsel %vm476, %v468, %v473
  %v478 = vrsqrt.pop %v414
  %v479 = vmul.f32 %v478, %v414
  %v480 = vmul.f32 %v479, %v478
  %v481 = vmul.f32 0.5, %v480
  %v482 = vsub.f32 1.5, %v481
  %v483 = vmul.f32 %v478, %v482
  %vm484 = vweird.f32 %v414
  %vm485 = vweird.f32 %v478
  %vm486 = vmor %vm484, %vm485
  %v487 = vsel %vm486, %v478, %v483
  %v488 = vrsqrt.pop %v415
  %v489 = vmul.f32 %v488, %v415
  %v490 = vmul.f32 %v489, %v488
  %v491 = vmul.f32 0.5, %v490
  %v492 = vsub.f32 1.5, %v491
  %v493 = vmul.f32 %v488, %v492
  %vm494 = vweird.f32 %v415
  %vm495 = vweird.f32 %v488
  %vm496 = vmor %vm494, %vm495
  %v497 = vsel %vm496, %v488, %v493
  %v498 = vrsqrt.pop %v416
  %v499 = vmul.f32 %v498, %v416
  %v500 = vmul.f32 %v499, %v498
  %v501 = vmul.f32 0.5, %v500
  %v502 = vsub.f32 1.5, %v501
  %v503 = vmul.f32 %v498, %v502
  %vm504 = vweird.f32 %v416
  %vm505 = vweird.f32 %v498
  %vm506 = vmor %vm504, %vm505
  %v507 = vsel %vm506, %v498, %v503
  %v508 = vrsqrt.pop %v417
  %v509 = vmul.f32 %v508, %v417
  %v510 = vmul.f32 %v509, %v508
  %v511 = vmul.f32 0.5, %v510
  %v512 = vsub.f32 1.5, %v511
  %v513 = vmul.f32 %v508, %v512
  %vm514 = vweird.f32 %v417
  %vm515 = vweird.f32 %v508
  %vm516 = vmor %vm514, %vm515
  %v517 = vsel %vm516, %v508, %v513
  %v518 = vmul.f32 %v348, %v427
  %v519 = vmul.f32 %v349, %v437
  %v520 = vmul.f32 %v350, %v447
  %v521 = vmul.f32 %v351, %v457
  %v522 = vmul.f32 %v352, %v467
  %v523 = vmul.f32 %v353, %v477
  %v524 = vmul.f32 %v354, %v487
  %v525 = vmul.f32 %v355, %v497
  %v526 = vmul.f32 %v356, %v507
  %v527 = vmul.f32 %v357, %v517
  %v529 = vperm.slane %v298, 0
  %v531 = vmul.f32 %v518, %v529
  %v532 = vmul.f32 %v519, %v529
  %v533 = vmul.f32 %v520, %v529
  %v534 = vmul.f32 %v521, %v529
  %v535 = vmul.f32 %v522, %v529
  %v536 = vmul.f32 %v523, %v529
  %v537 = vmul.f32 %v524, %v529
  %v538 = vmul.f32 %v525, %v529
  %v539 = vmul.f32 %v526, %v529
  %v540 = vmul.f32 %v527, %v529
  %v542 = vperm.slane %v299, 0
  %v544 = vadd.f32 %v531, %v542
  %v545 = vadd.f32 %v532, %v542
  %v546 = vadd.f32 %v533, %v542
  %v547 = vadd.f32 %v534, %v542
  %v548 = vadd.f32 %v535, %v542
  %v549 = vadd.f32 %v536, %v542
  %v550 = vadd.f32 %v537, %v542
  %v551 = vadd.f32 %v538, %v542
  %v552 = vadd.f32 %v539, %v542
  %v553 = vadd.f32 %v540, %v542
  %v554 = vpack.c.bf16 %v545, %v544
  %v555 = vpack.c.bf16 %v547, %v546
  %v556 = vpack.c.bf16 %v549, %v548
  %v557 = vpack.c.bf16 %v551, %v550
  %v558 = vpack.c.bf16 %v553, %v552
  %v559 = vld [vmem:[%s8] sm:$0xf]
  %v560 = vld [vmem:[%s8 + $0x4] sm:$0xf]
  %v561 = vld [vmem:[%s8 + $0x8] sm:$0xf]
  %v562 = vld [vmem:[%s8 + $0xc] sm:$0xf]
  %v563 = vld [vmem:[%s9] sm:$0x1]
  %v565 = vperm.slane %v563, 0
  %v571 = vunpack.c.l.b16 %v559
  %v572 = vunpack.c.l.b16 %v560
  %v573 = vunpack.c.l.b16 %v561
  %v574 = vunpack.c.l.b16 %v562
  %v575 = vpack.c.b16 %v572, %v571
  %v576 = vpack.c.b16 %v574, %v573
  %v580 = vsel %vm300, %v554, 0
  %v583 = vsel %vm300, %v555, 0
  %v586 = vsel %vm300, %v556, 0
  %v589 = vsel %vm300, %v557, 0
  %v592 = vsel %vm300, %v558, 0
  %594 = vmatpush.bf16.msra.mxu0 0
  %595 = vmatpush.bf16.msra.mxu0 0
  %596 = vmatpush.bf16.msra.mxu0 0
  %597 = vmatpush.bf16.msra.mxu0 0
  %598 = vmatpush.bf16.msra.mxu0 0
  %599 = vmatpush.bf16.msra.mxu0 0
  %600 = vmatpush.bf16.msra.mxu0 %v576
  %601 = vmatpush.bf16.msra.mxu0 %v575
  %602 = vmatmul.bf16.gmra.mxu0 %v580
  %v603 = vpop.f32.mrf.mxu0
  %v604 = vadd.f32 %v565, %v603
  %v605 = vpop.f32.mrf.mxu0
  %v606 = vadd.f32 %v565, %v605
  %607 = vmatmul.bf16.gmra.mxu0 %v583
  %v608 = vpop.f32.mrf.mxu0
  %v609 = vadd.f32 %v565, %v608
  %v610 = vpop.f32.mrf.mxu0
  %v611 = vadd.f32 %v565, %v610
  %612 = vmatmul.bf16.gmra.mxu0 %v586
  %v613 = vpop.f32.mrf.mxu0
  %v614 = vadd.f32 %v565, %v613
  %v615 = vpop.f32.mrf.mxu0
  %v616 = vadd.f32 %v565, %v615
  %617 = vmatmul.bf16.gmra.mxu0 %v589
  %v618 = vpop.f32.mrf.mxu0
  %v619 = vadd.f32 %v565, %v618
  %v620 = vpop.f32.mrf.mxu0
  %v621 = vadd.f32 %v565, %v620
  %622 = vmatmul.bf16.gmra.mxu0 %v592
  %v623 = vpop.f32.mrf.mxu0
  %v624 = vadd.f32 %v565, %v623
  %v625 = vpop.f32.mrf.mxu0
  %v626 = vadd.f32 %v565, %v625
  %627 = vdwg.mxu0
  %v628 = vmax.f32 %v604, 0.0
  %v629 = vmax.f32 %v606, 0.0
  %v630 = vmax.f32 %v609, 0.0
  %v631 = vmax.f32 %v611, 0.0
  %v632 = vmax.f32 %v614, 0.0
  %v633 = vmax.f32 %v616, 0.0
  %v634 = vmax.f32 %v619, 0.0
  %v635 = vmax.f32 %v621, 0.0
  %v636 = vmax.f32 %v624, 0.0
  %v637 = vmax.f32 %v626, 0.0
  %v638 = vpack.c.bf16 %v629, %v628
  %v639 = vpack.c.bf16 %v631, %v630
  %v640 = vpack.c.bf16 %v633, %v632
  %v641 = vpack.c.bf16 %v635, %v634
  %v642 = vpack.c.bf16 %v637, %v636
  %v643 = vld [vmem:[%s10] sm:$0xf]
  %v644 = vld [vmem:[%s10 + $0x4] sm:$0xf]
  %v645 = vld [vmem:[%s10 + $0x8] sm:$0xf]
  %v646 = vld [vmem:[%s10 + $0xc] sm:$0xf]
  %v647 = vld [vmem:[%s10 + $0x10] sm:$0xf]
  %v648 = vld [vmem:[%s10 + $0x14] sm:$0xf]
  %v649 = vld [vmem:[%s10 + $0x18] sm:$0xf]
  %v650 = vld [vmem:[%s10 + $0x1c] sm:$0xf]
  %v651 = vld [vmem:[%s11] sm:$0x1]
  %v653 = vperm.slane %v651, 0
  %v663 = vunpack.c.l.b16 %v643
  %v664 = vunpack.c.l.b16 %v644
  %v665 = vunpack.c.l.b16 %v645
  %v666 = vunpack.c.l.b16 %v646
  %v667 = vunpack.c.l.b16 %v647
  %v668 = vunpack.c.l.b16 %v648
  %v669 = vunpack.c.l.b16 %v649
  %v670 = vunpack.c.l.b16 %v650
  %v671 = vpack.c.b16 %v664, %v663
  %v672 = vpack.c.b16 %v666, %v665
  %v673 = vpack.c.b16 %v668, %v667
  %v674 = vpack.c.b16 %v670, %v669
  %vm679 = vcmask 523264
  %v681 = vsel %vm679, %v638, 0
  %v684 = vsel %vm679, %v639, 0
  %v687 = vsel %vm679, %v640, 0
  %v690 = vsel %vm679, %v641, 0
  %v693 = vsel %vm679, %v642, 0
  %695 = vmatpush.bf16.msra.mxu0 0
  %696 = vmatpush.bf16.msra.mxu0 0
  %697 = vmatpush.bf16.msra.mxu0 0
  %698 = vmatpush.bf16.msra.mxu0 0
  %699 = vmatpush.bf16.msra.mxu0 %v674
  %700 = vmatpush.bf16.msra.mxu0 %v673
  %701 = vmatpush.bf16.msra.mxu0 %v672
  %702 = vmatpush.bf16.msra.mxu0 %v671
  %703 = vmatmul.bf16.gmra.mxu0 %v681
  %v704 = vpop.f32.mrf.mxu0
  %v705 = vadd.f32 %v653, %v704
  %v706 = vpop.f32.mrf.mxu0
  %v707 = vadd.f32 %v653, %v706
  %708 = vmatmul.bf16.gmra.mxu0 %v684
  %v709 = vpop.f32.mrf.mxu0
  %v710 = vadd.f32 %v653, %v709
  %v711 = vpop.f32.mrf.mxu0
  %v712 = vadd.f32 %v653, %v711
  %713 = vmatmul.bf16.gmra.mxu0 %v687
  %v714 = vpop.f32.mrf.mxu0
  %v715 = vadd.f32 %v653, %v714
  %v716 = vpop.f32.mrf.mxu0
  %v717 = vadd.f32 %v653, %v716
  %718 = vmatmul.bf16.gmra.mxu0 %v690
  %v719 = vpop.f32.mrf.mxu0
  %v720 = vadd.f32 %v653, %v719
  %v721 = vpop.f32.mrf.mxu0
  %v722 = vadd.f32 %v653, %v721
  %723 = vmatmul.bf16.gmra.mxu0 %v693
  %v724 = vpop.f32.mrf.mxu0
  %v725 = vadd.f32 %v653, %v724
  %v726 = vpop.f32.mrf.mxu0
  %v727 = vadd.f32 %v653, %v726
  %728 = vdwg.mxu0
  %v729 = vadd.f32 %v544, %v705
  %v730 = vadd.f32 %v545, %v707
  %v731 = vadd.f32 %v546, %v710
  %v732 = vadd.f32 %v547, %v712
  %v733 = vadd.f32 %v548, %v715
  %v734 = vadd.f32 %v549, %v717
  %v735 = vadd.f32 %v550, %v720
  %v736 = vadd.f32 %v551, %v722
  %v737 = vadd.f32 %v552, %v725
  %v738 = vadd.f32 %v553, %v727
  %v739 = vld [vmem:[%s12] sm:$0x1]
  %v740 = vld [vmem:[%s13] sm:$0x1]
  %v741 = vsel %vm300, %v729, 0.0
  %742 = vadd.xlane.f32.xlu0 %v741
  %v743 = vpop.xlane.xlu0 %742
  %v744 = vsel %vm300, %v730, 0.0
  %745 = vadd.xlane.f32.xlu0 %v744
  %v746 = vpop.xlane.xlu0 %745
  %v747 = vsel %vm300, %v731, 0.0
  %748 = vadd.xlane.f32.xlu0 %v747
  %v749 = vpop.xlane.xlu0 %748
  %v750 = vsel %vm300, %v732, 0.0
  %751 = vadd.xlane.f32.xlu0 %v750
  %v752 = vpop.xlane.xlu0 %751
  %v753 = vsel %vm300, %v733, 0.0
  %754 = vadd.xlane.f32.xlu0 %v753
  %v755 = vpop.xlane.xlu0 %754
  %v756 = vsel %vm300, %v734, 0.0
  %757 = vadd.xlane.f32.xlu0 %v756
  %v758 = vpop.xlane.xlu0 %757
  %v759 = vsel %vm300, %v735, 0.0
  %760 = vadd.xlane.f32.xlu0 %v759
  %v761 = vpop.xlane.xlu0 %760
  %v762 = vsel %vm300, %v736, 0.0
  %763 = vadd.xlane.f32.xlu0 %v762
  %v764 = vpop.xlane.xlu0 %763
  %v765 = vsel %vm300, %v737, 0.0
  %766 = vadd.xlane.f32.xlu0 %v765
  %v767 = vpop.xlane.xlu0 %766
  %v768 = vsel %vm300, %v738, 0.0
  %769 = vadd.xlane.f32.xlu0 %v768
  %v770 = vpop.xlane.xlu0 %769
  %v771 = vmul.f32 %v743, %v337
  %v772 = vmul.f32 %v746, %v337
  %v773 = vmul.f32 %v749, %v337
  %v774 = vmul.f32 %v752, %v337
  %v775 = vmul.f32 %v755, %v337
  %v776 = vmul.f32 %v758, %v337
  %v777 = vmul.f32 %v761, %v337
  %v778 = vmul.f32 %v764, %v337
  %v779 = vmul.f32 %v767, %v337
  %v780 = vmul.f32 %v770, %v337
  %v781 = vsub.f32 %v729, %v771
  %v782 = vsub.f32 %v730, %v772
  %v783 = vsub.f32 %v731, %v773
  %v784 = vsub.f32 %v732, %v774
  %v785 = vsub.f32 %v733, %v775
  %v786 = vsub.f32 %v734, %v776
  %v787 = vsub.f32 %v735, %v777
  %v788 = vsub.f32 %v736, %v778
  %v789 = vsub.f32 %v737, %v779
  %v790 = vsub.f32 %v738, %v780
  %v791 = vmul.f32 %v781, %v781
  %v792 = vmul.f32 %v782, %v782
  %v793 = vmul.f32 %v783, %v783
  %v794 = vmul.f32 %v784, %v784
  %v795 = vmul.f32 %v785, %v785
  %v796 = vmul.f32 %v786, %v786
  %v797 = vmul.f32 %v787, %v787
  %v798 = vmul.f32 %v788, %v788
  %v799 = vmul.f32 %v789, %v789
  %v800 = vmul.f32 %v790, %v790
  %v801 = vsel %vm300, %v791, 0.0
  %802 = vadd.xlane.f32.xlu0 %v801
  %v803 = vpop.xlane.xlu0 %802
  %v804 = vsel %vm300, %v792, 0.0
  %805 = vadd.xlane.f32.xlu0 %v804
  %v806 = vpop.xlane.xlu0 %805
  %v807 = vsel %vm300, %v793, 0.0
  %808 = vadd.xlane.f32.xlu0 %v807
  %v809 = vpop.xlane.xlu0 %808
  %v810 = vsel %vm300, %v794, 0.0
  %811 = vadd.xlane.f32.xlu0 %v810
  %v812 = vpop.xlane.xlu0 %811
  %v813 = vsel %vm300, %v795, 0.0
  %814 = vadd.xlane.f32.xlu0 %v813
  %v815 = vpop.xlane.xlu0 %814
  %v816 = vsel %vm300, %v796, 0.0
  %817 = vadd.xlane.f32.xlu0 %v816
  %v818 = vpop.xlane.xlu0 %817
  %v819 = vsel %vm300, %v797, 0.0
  %820 = vadd.xlane.f32.xlu0 %v819
  %v821 = vpop.xlane.xlu0 %820
  %v822 = vsel %vm300, %v798, 0.0
  %823 = vadd.xlane.f32.xlu0 %v822
  %v824 = vpop.xlane.xlu0 %823
  %v825 = vsel %vm300, %v799, 0.0
  %826 = vadd.xlane.f32.xlu0 %v825
  %v827 = vpop.xlane.xlu0 %826
  %v828 = vsel %vm300, %v800, 0.0
  %829 = vadd.xlane.f32.xlu0 %v828
  %v830 = vpop.xlane.xlu0 %829
  %v831 = vmul.f32 %v803, %v337
  %v832 = vmul.f32 %v806, %v337
  %v833 = vmul.f32 %v809, %v337
  %v834 = vmul.f32 %v812, %v337
  %v835 = vmul.f32 %v815, %v337
  %v836 = vmul.f32 %v818, %v337
  %v837 = vmul.f32 %v821, %v337
  %v838 = vmul.f32 %v824, %v337
  %v839 = vmul.f32 %v827, %v337
  %v840 = vmul.f32 %v830, %v337
  %v841 = vadd.f32 %v831, 1e-05
  %v842 = vadd.f32 %v832, 1e-05
  %v843 = vadd.f32 %v833, 1e-05
  %v844 = vadd.f32 %v834, 1e-05
  %v845 = vadd.f32 %v835, 1e-05
  %v846 = vadd.f32 %v836, 1e-05
  %v847 = vadd.f32 %v837, 1e-05
  %v848 = vadd.f32 %v838, 1e-05
  %v849 = vadd.f32 %v839, 1e-05
  %v850 = vadd.f32 %v840, 1e-05
  %v851 = vrsqrt.pop %v841
  %v852 = vmul.f32 %v851, %v841
  %v853 = vmul.f32 %v852, %v851
  %v854 = vmul.f32 0.5, %v853
  %v855 = vsub.f32 1.5, %v854
  %v856 = vmul.f32 %v851, %v855
  %vm857 = vweird.f32 %v841
  %vm858 = vweird.f32 %v851
  %vm859 = vmor %vm857, %vm858
  %v860 = vsel %vm859, %v851, %v856
  %v861 = vrsqrt.pop %v842
  %v862 = vmul.f32 %v861, %v842
  %v863 = vmul.f32 %v862, %v861
  %v864 = vmul.f32 0.5, %v863
  %v865 = vsub.f32 1.5, %v864
  %v866 = vmul.f32 %v861, %v865
  %vm867 = vweird.f32 %v842
  %vm868 = vweird.f32 %v861
  %vm869 = vmor %vm867, %vm868
  %v870 = vsel %vm869, %v861, %v866
  %v871 = vrsqrt.pop %v843
  %v872 = vmul.f32 %v871, %v843
  %v873 = vmul.f32 %v872, %v871
  %v874 = vmul.f32 0.5, %v873
  %v875 = vsub.f32 1.5, %v874
  %v876 = vmul.f32 %v871, %v875
  %vm877 = vweird.f32 %v843
  %vm878 = vweird.f32 %v871
  %vm879 = vmor %vm877, %vm878
  %v880 = vsel %vm879, %v871, %v876
  %v881 = vrsqrt.pop %v844
  %v882 = vmul.f32 %v881, %v844
  %v883 = vmul.f32 %v882, %v881
  %v884 = vmul.f32 0.5, %v883
  %v885 = vsub.f32 1.5, %v884
  %v886 = vmul.f32 %v881, %v885
  %vm887 = vweird.f32 %v844
  %vm888 = vweird.f32 %v881
  %vm889 = vmor %vm887, %vm888
  %v890 = vsel %vm889, %v881, %v886
  %v891 = vrsqrt.pop %v845
  %v892 = vmul.f32 %v891, %v845
  %v893 = vmul.f32 %v892, %v891
  %v894 = vmul.f32 0.5, %v893
  %v895 = vsub.f32 1.5, %v894
  %v896 = vmul.f32 %v891, %v895
  %vm897 = vweird.f32 %v845
  %vm898 = vweird.f32 %v891
  %vm899 = vmor %vm897, %vm898
  %v900 = vsel %vm899, %v891, %v896
  %v901 = vrsqrt.pop %v846
  %v902 = vmul.f32 %v901, %v846
  %v903 = vmul.f32 %v902, %v901
  %v904 = vmul.f32 0.5, %v903
  %v905 = vsub.f32 1.5, %v904
  %v906 = vmul.f32 %v901, %v905
  %vm907 = vweird.f32 %v846
  %vm908 = vweird.f32 %v901
  %vm909 = vmor %vm907, %vm908
  %v910 = vsel %vm909, %v901, %v906
  %v911 = vrsqrt.pop %v847
  %v912 = vmul.f32 %v911, %v847
  %v913 = vmul.f32 %v912, %v911
  %v914 = vmul.f32 0.5, %v913
  %v915 = vsub.f32 1.5, %v914
  %v916 = vmul.f32 %v911, %v915
  %vm917 = vweird.f32 %v847
  %vm918 = vweird.f32 %v911
  %vm919 = vmor %vm917, %vm918
  %v920 = vsel %vm919, %v911, %v916
  %v921 = vrsqrt.pop %v848
  %v922 = vmul.f32 %v921, %v848
  %v923 = vmul.f32 %v922, %v921
  %v924 = vmul.f32 0.5, %v923
  %v925 = vsub.f32 1.5, %v924
  %v926 = vmul.f32 %v921, %v925
  %vm927 = vweird.f32 %v848
  %vm928 = vweird.f32 %v921
  %vm929 = vmor %vm927, %vm928
  %v930 = vsel %vm929, %v921, %v926
  %v931 = vrsqrt.pop %v849
  %v932 = vmul.f32 %v931, %v849
  %v933 = vmul.f32 %v932, %v931
  %v934 = vmul.f32 0.5, %v933
  %v935 = vsub.f32 1.5, %v934
  %v936 = vmul.f32 %v931, %v935
  %vm937 = vweird.f32 %v849
  %vm938 = vweird.f32 %v931
  %vm939 = vmor %vm937, %vm938
  %v940 = vsel %vm939, %v931, %v936
  %v941 = vrsqrt.pop %v850
  %v942 = vmul.f32 %v941, %v850
  %v943 = vmul.f32 %v942, %v941
  %v944 = vmul.f32 0.5, %v943
  %v945 = vsub.f32 1.5, %v944
  %v946 = vmul.f32 %v941, %v945
  %vm947 = vweird.f32 %v850
  %vm948 = vweird.f32 %v941
  %vm949 = vmor %vm947, %vm948
  %v950 = vsel %vm949, %v941, %v946
  %v951 = vmul.f32 %v781, %v860
  %v952 = vmul.f32 %v782, %v870
  %v953 = vmul.f32 %v783, %v880
  %v954 = vmul.f32 %v784, %v890
  %v955 = vmul.f32 %v785, %v900
  %v956 = vmul.f32 %v786, %v910
  %v957 = vmul.f32 %v787, %v920
  %v958 = vmul.f32 %v788, %v930
  %v959 = vmul.f32 %v789, %v940
  %v960 = vmul.f32 %v790, %v950
  %v962 = vperm.slane %v739, 0
  %v964 = vmul.f32 %v951, %v962
  %v965 = vmul.f32 %v952, %v962
  %v966 = vmul.f32 %v953, %v962
  %v967 = vmul.f32 %v954, %v962
  %v968 = vmul.f32 %v955, %v962
  %v969 = vmul.f32 %v956, %v962
  %v970 = vmul.f32 %v957, %v962
  %v971 = vmul.f32 %v958, %v962
  %v972 = vmul.f32 %v959, %v962
  %v973 = vmul.f32 %v960, %v962
  %v975 = vperm.slane %v740, 0
  %v977 = vadd.f32 %v964, %v975
  %v978 = vadd.f32 %v965, %v975
  %v979 = vadd.f32 %v966, %v975
  %v980 = vadd.f32 %v967, %v975
  %v981 = vadd.f32 %v968, %v975
  %v982 = vadd.f32 %v969, %v975
  %v983 = vadd.f32 %v970, %v975
  %v984 = vadd.f32 %v971, %v975
  %v985 = vadd.f32 %v972, %v975
  %v986 = vadd.f32 %v973, %v975
  %987 = vst.msk [vmem:[%s14] sm:$0xff] %vm300, %v977
  %988 = vst.msk [vmem:[%s14 + $0x8] sm:$0xff] %vm300, %v978
  %989 = vst.msk [vmem:[%s14 + $0x10] sm:$0xff] %vm300, %v979
  %990 = vst.msk [vmem:[%s14 + $0x18] sm:$0xff] %vm300, %v980
  %991 = vst.msk [vmem:[%s14 + $0x20] sm:$0xff] %vm300, %v981
  %992 = vst.msk [vmem:[%s14 + $0x28] sm:$0xff] %vm300, %v982
  %993 = vst.msk [vmem:[%s14 + $0x30] sm:$0xff] %vm300, %v983
  %994 = vst.msk [vmem:[%s14 + $0x38] sm:$0xff] %vm300, %v984
  %995 = vst.msk [vmem:[%s14 + $0x40] sm:$0xff] %vm300, %v985
  %996 = vst.msk [vmem:[%s14 + $0x48] sm:$0xff] %vm300, %v986
  // Predicated region
  $region58: #{encoder_forward.5} parent=0 // pred_check
    _
  $region59: #{encoder_forward.5} parent=0 // pred_check_branch
    %998 = sbr.rel (0) target = $region61
  $region60: #{encoder_forward.5} parent=0 // pred_region
    _
  $region61: #{encoder_forward.5} parent=0 // pred_fallthru
    _
  // Predicated region
  $region62: #{encoder_forward.5} parent=0 // pred_check
    _
  $region63: #{encoder_forward.5} parent=0 // pred_check_branch
    %1000 = sbr.rel (0) target = $region65
  $region64: #{encoder_forward.5} parent=0 // pred_region
    _
  $region65: #{encoder_forward.5} parent=0 // pred_fallthru
    _

</llo_original>
